<compile_context>
chip_gen: v7x
topology: tpu7x:2x2x1
jax: 0.10.0
libtpu: 0.0.40
codegen_flags: <defaults>
</compile_context>

<pallas_src>
import jax
import jax.numpy as jnp
from jax.experimental import pallas as pl
from jax.experimental.pallas import tpu as pltpu

BN_EPS = 1e-5
COS_EPS = 1e-8


def _vmem_spec():
    return pl.BlockSpec(memory_space=pltpu.MemorySpace.VMEM)


# ---------------------------------------------------------------------------
# Single fused forward kernel
# ---------------------------------------------------------------------------
def fused_forward_kernel(
    pairs_ref,                       # [2P, 1] int32: [src_0..src_{P-1}, dst_0..dst_{P-1}]
    a_ref, x_ref,                    # [N, N] bf16 mean-adjacency, [N, Fin] bf16 features
    # SAGE layer 0 (Fin != H): lin_l weight + merged [lin_r | skip] weight
    wl0_ref, wrs0_ref, sc0_ref, sh0_ref, bsk0_ref,
    # SAGE layers 1, 2 (Fin == H): single merged [lin_l | lin_r | skip] weight
    wall1_ref, sc1_ref, sh1_ref, bsk1_ref,
    wall2_ref, sc2_ref, sh2_ref, bsk2_ref,
    # link-prediction MLP
    w0sd_ref, w0f_ref, msc0_ref, msh0_ref,
    w1_ref, msc1_ref, msh1_ref,
    w2_ref, msc2_ref, msh2_ref,
    w3_ref, b3_ref,
    out_ref,                         # [P, 1] f32 logits
):
    H = wl0_ref.shape[1]
    N = a_ref.shape[0]
    P = out_ref.shape[0]

    a = a_ref[...]                   # bf16 adjacency, resident for all three layers

    # ----- SAGE layer 0 (Fin small: keep (A@X)@Wl form) -----
    x0 = x_ref[...]
    agg0 = jnp.dot(a, x0, preferred_element_type=jnp.float32)                 # A_mean @ X
    xw0 = jnp.dot(x0, wrs0_ref[...], preferred_element_type=jnp.float32)      # X @ [Wr|Wskip]
    conv0 = jnp.dot(agg0.astype(jnp.bfloat16), wl0_ref[...],
                    preferred_element_type=jnp.float32) + xw0[:, :H]
    h = jnp.maximum(conv0 * sc0_ref[...] + sh0_ref[...], 0.0) + xw0[:, H:] + bsk0_ref[...]

    # ----- SAGE layers 1, 2: X @ [Wl|Wr|Wskip] (one K=128,N=384 matmul) then A @ (X.Wl) -----
    def sage_merged(h_prev, wall_ref, sc_ref, sh_ref, bsk_ref):
        xb = h_prev.astype(jnp.bfloat16)
        xw = jnp.dot(xb, wall_ref[...], preferred_element_type=jnp.float32)   # [N, 3H]
        conv = jnp.dot(a, xw[:, :H].astype(jnp.bfloat16),
                       preferred_element_type=jnp.float32) + xw[:, H:2 * H]
        return (jnp.maximum(conv * sc_ref[...] + sh_ref[...], 0.0)
                + xw[:, 2 * H:] + bsk_ref[...])

    h = sage_merged(h, wall1_ref, sc1_ref, sh1_ref, bsk1_ref)
    h = sage_merged(h, wall2_ref, sc2_ref, sh2_ref, bsk2_ref)                 # [N, H] f32

    # ----- endpoint gather: single stacked bf16 one-hot matmul [2P,N] @ [N,H] -----
    hb = h.astype(jnp.bfloat16)
    node_iota = jax.lax.broadcasted_iota(jnp.int32, (2 * P, N), 1)
    sel = (node_iota == pairs_ref[...]).astype(jnp.bfloat16)                  # exact 0/1
    gathered = jnp.dot(sel, hb, preferred_element_type=jnp.float32)           # [2P, H]
    src = gathered[:P]
    dst = gathered[P:]

    # ----- pairwise link features (f32 epilogue) -----
    dot = jnp.sum(src * dst, axis=1, keepdims=True)
    ns2 = jnp.sum(src * src, axis=1, keepdims=True)
    nd2 = jnp.sum(dst * dst, axis=1, keepdims=True)
    l2 = jnp.sqrt(jnp.maximum(ns2 + nd2 - 2.0 * dot, 0.0))                    # clamp >= 0
    l1 = jnp.sum(jnp.abs(src - dst), axis=1, keepdims=True)
    denom = jnp.maximum(jnp.sqrt(ns2), COS_EPS) * jnp.maximum(jnp.sqrt(nd2), COS_EPS)
    cos = dot / denom                                                         # exact division

    # ----- MLP layer 0: single [P,2H]@[2H,2H] matmul + rank-1 pair-feature updates -----
    sd = jnp.concatenate([src, dst], axis=1).astype(jnp.bfloat16)             # [P, 2H]
    w0f = w0f_ref[...]                                                        # [4, 2H] f32
    h0 = jnp.dot(sd, w0sd_ref[...], preferred_element_type=jnp.float32)
    h0 = h0 + dot * w0f[0:1, :] + l2 * w0f[1:2, :] + l1 * w0f[2:3, :] + cos * w0f[3:4, :]
    h0 = jnp.maximum(h0 * msc0_ref[...] + msh0_ref[...], 0.0)

    h1 = jnp.dot(h0.astype(jnp.bfloat16), w1_ref[...], preferred_element_type=jnp.float32)
    h1 = jnp.maximum(h1 * msc1_ref[...] + msh1_ref[...], 0.0)

    h2 = jnp.dot(h1.astype(jnp.bfloat16), w2_ref[...], preferred_element_type=jnp.float32)
    h2 = jnp.maximum(h2 * msc2_ref[...] + msh2_ref[...], 0.0)

    # final projection to 1 logit as a row reduction (avoids a 1-lane MXU matmul)
    out_ref[...] = jnp.sum(h2 * w3_ref[...], axis=1, keepdims=True) + b3_ref[...]


# ---------------------------------------------------------------------------
# Wrapper: one pallas_call for the whole forward
# ---------------------------------------------------------------------------
def graphsage_link_predictor(a_norm, x, edge_pairs, kp):
    p = edge_pairs.shape[1]
    # [2, P] -> [2P, 1] column: [src_0..src_{P-1}, dst_0..dst_{P-1}]
    pairs_col = edge_pairs.astype(jnp.int32).reshape(2 * p, 1)

    args = [pairs_col, a_norm.astype(jnp.bfloat16), x.astype(jnp.bfloat16)]
    s0, s1, s2 = kp["sage"]
    args += [s0["wl"], s0["wrs"], s0["scale"], s0["shift"], s0["bskip"]]
    args += [s1["wall"], s1["scale"], s1["shift"], s1["bskip"]]
    args += [s2["wall"], s2["scale"], s2["shift"], s2["bskip"]]
    m = kp["mlp"]
    args += [m["w0sd"], m["w0f"], m["scale0"], m["shift0"]]
    args += [m["w1"], m["scale1"], m["shift1"]]
    args += [m["w2"], m["scale2"], m["shift2"]]
    args += [m["w3"], m["b3"]]

    out = pl.pallas_call(
        fused_forward_kernel,
        out_shape=jax.ShapeDtypeStruct((p, 1), jnp.float32),
        in_specs=[_vmem_spec() for _ in args],
        out_specs=_vmem_spec(),
    )(*args)
    return jnp.squeeze(out, axis=-1)


# ---------------------------------------------------------------------------
# Parameter construction (raw, PyTorch-shaped) + folding into kernel operands
# ---------------------------------------------------------------------------
def _init_linear(key, fan_in, fan_out, bias=True):
    kw, kb = jax.random.split(key)
    bound = 1.0 / float(fan_in) ** 0.5
    w = jax.random.uniform(kw, (fan_in, fan_out), jnp.float32, -bound, bound)
    b = jax.random.uniform(kb, (fan_out,), jnp.float32, -bound, bound) if bias else None
    return w, b


def _init_bn(key, feat):
    km, kv, kg, kb = jax.random.split(key, 4)
    return dict(
        gamma=1.0 + 0.05 * jax.random.normal(kg, (feat,), jnp.float32),
        beta=0.05 * jax.random.normal(kb, (feat,), jnp.float32),
        mean=0.1 * jax.random.normal(km, (feat,), jnp.float32),
        var=1.0 + 0.1 * jax.random.uniform(kv, (feat,), jnp.float32),
    )


def init_params(key, in_channels, hidden, num_layers=3):
    params = {"sage_layers": [], "mlp": {}}
    dims_in = [in_channels] + [hidden] * (num_layers - 1)
    for i in range(num_layers):
        key, k1, k2, k3, k4 = jax.random.split(key, 5)
        wl, bl = _init_linear(k1, dims_in[i], hidden, bias=True)    # SAGEConv lin_l
        wr, _ = _init_linear(k2, dims_in[i], hidden, bias=False)    # SAGEConv lin_r (no bias)
        wskip, bskip = _init_linear(k3, dims_in[i], hidden, bias=True)
        params["sage_layers"].append(
            dict(wl=wl, bl=bl, wr=wr, wskip=wskip, bskip=bskip, bn=_init_bn(k4, hidden)))

    mlp_dims = [(2 * hidden + 4, 2 * hidden), (2 * hidden, hidden), (hidden, hidden // 2)]
    for j, (fi, fo) in enumerate(mlp_dims):
        key, ka, kb = jax.random.split(key, 3)
        w, b = _init_linear(ka, fi, fo, bias=True)
        params["mlp"][f"layer{j}"] = dict(w=w, b=b, bn=_init_bn(kb, fo))
    key, kf = jax.random.split(key)
    w4, b4 = _init_linear(kf, hidden // 2, 1, bias=True)
    params["mlp"]["final"] = dict(w=w4, b=b4)
    return params


def fold_params(raw):
    """Fold BN(eval) + linear biases, merge shared-LHS weights, cast MXU inputs to bf16."""
    def bn_scale_shift(bn):
        scale = bn["gamma"] / jnp.sqrt(bn["var"] + BN_EPS)
        shift = bn["beta"] - bn["mean"] * scale
        return scale, shift

    lyrs = raw["sage_layers"]
    l0 = lyrs[0]
    s, sh = bn_scale_shift(l0["bn"])
    sage = [dict(
        wl=l0["wl"].astype(jnp.bfloat16),
        wrs=jnp.concatenate([l0["wr"], l0["wskip"]], axis=1).astype(jnp.bfloat16),
        scale=s[None, :],
        shift=(sh + l0["bl"] * s)[None, :],                 # lin_l bias folded into BN shift
        bskip=l0["bskip"][None, :],
    )]
    for lyr in lyrs[1:]:
        s, sh = bn_scale_shift(lyr["bn"])
        sage.append(dict(
            wall=jnp.concatenate([lyr["wl"], lyr["wr"], lyr["wskip"]],
                                 axis=1).astype(jnp.bfloat16),   # [H, 3H]
            scale=s[None, :],
            shift=(sh + lyr["bl"] * s)[None, :],
            bskip=lyr["bskip"][None, :],
        ))

    mr = raw["mlp"]
    w0 = mr["layer0"]["w"]
    H = w0.shape[1] // 2
    s0, sh0 = bn_scale_shift(mr["layer0"]["bn"])
    s1, sh1 = bn_scale_shift(mr["layer1"]["bn"])
    s2, sh2 = bn_scale_shift(mr["layer2"]["bn"])
    mlp = dict(
        w0sd=w0[:2 * H].astype(jnp.bfloat16),                # [2H, 2H] stacked [W_src; W_dst]
        w0f=w0[2 * H:],                                      # [4, 2H] pair-feature rows (f32)
        scale0=s0[None, :], shift0=(sh0 + mr["layer0"]["b"] * s0)[None, :],
        w1=mr["layer1"]["w"].astype(jnp.bfloat16),
        scale1=s1[None, :], shift1=(sh1 + mr["layer1"]["b"] * s1)[None, :],
        w2=mr["layer2"]["w"].astype(jnp.bfloat16),
        scale2=s2[None, :], shift2=(sh2 + mr["layer2"]["b"] * s2)[None, :],
        w3=mr["final"]["w"].T,                               # [1, H//2] f32
        b3=mr["final"]["b"][None, :],                        # [1, 1] f32
    )
    return dict(sage=sage, mlp=mlp)


def build_mean_adjacency(edge_index, num_nodes):
    # A_mean[dst, src] = 1 / in_degree(dst); isolated nodes get zero rows,
    # matching PyG scatter-mean semantics.
    src, dst = edge_index[0], edge_index[1]
    a = jnp.zeros((num_nodes, num_nodes), jnp.float32).at[dst, src].add(1.0)
    deg = a.sum(axis=1, keepdims=True)
    return a / jnp.maximum(deg, 1.0)


# ---------------------------------------------------------------------------
# Pure-JAX f32 reference (mirrors the PyTorch eval-mode forward) for tolerance check
# ---------------------------------------------------------------------------
def reference_forward(a_norm, x, edge_pairs, raw):
    h = x
    for lyr in raw["sage_layers"]:
        agg = a_norm @ h
        conv = agg @ lyr["wl"] + lyr["bl"] + h @ lyr["wr"]
        bn = lyr["bn"]
        hbn = (conv - bn["mean"]) / jnp.sqrt(bn["var"] + BN_EPS) * bn["gamma"] + bn["beta"]
        h = jnp.maximum(hbn, 0.0) + h @ lyr["wskip"] + lyr["bskip"]
    src = h[edge_pairs[0]]
    dst = h[edge_pairs[1]]
    diff = src - dst
    dot = jnp.sum(src * dst, axis=1, keepdims=True)
    l2 = jnp.sqrt(jnp.sum(diff * diff, axis=1, keepdims=True))
    l1 = jnp.sum(jnp.abs(diff), axis=1, keepdims=True)
    ns = jnp.sqrt(jnp.sum(src * src, axis=1, keepdims=True))
    nd = jnp.sqrt(jnp.sum(dst * dst, axis=1, keepdims=True))
    cos = dot / (jnp.maximum(ns, COS_EPS) * jnp.maximum(nd, COS_EPS))
    z = jnp.concatenate([src, dst, dot, l2, l1, cos], axis=1)
    m = raw["mlp"]
    for j in range(3):
        lp = m[f"layer{j}"]
        z = z @ lp["w"] + lp["b"]
        bn = lp["bn"]
        z = (z - bn["mean"]) / jnp.sqrt(bn["var"] + BN_EPS) * bn["gamma"] + bn["beta"]
        z = jnp.maximum(z, 0.0)
    z = z @ m["final"]["w"] + m["final"]["b"]
    return z[:, 0]


if __name__ == "__main__":
    N_NODES = 64       # number of graph nodes
    IN_CH = 16         # input feature dim
    HIDDEN = 128       # hidden_channels (matches the reference model)
    N_PAIRS = 16       # candidate link pairs

    key = jax.random.PRNGKey(0)
    k_x, k_e, k_p, k_params = jax.random.split(key, 4)

    x = jax.random.normal(k_x, (N_NODES, IN_CH), jnp.float32)

    # deterministic graph: bidirectional ring + some random extra edges
    idx = jnp.arange(N_NODES, dtype=jnp.int32)
    ring_src = jnp.concatenate([idx, (idx + 1) % N_NODES])
    ring_dst = jnp.concatenate([(idx + 1) % N_NODES, idx])
    extra = jax.random.randint(k_e, (2, 64), 0, N_NODES, jnp.int32)
    edge_index = jnp.stack([jnp.concatenate([ring_src, extra[0]]),
                            jnp.concatenate([ring_dst, extra[1]])], axis=0)

    edge_pairs = jax.random.randint(k_p, (2, N_PAIRS), 0, N_NODES, jnp.int32)

    a_norm = build_mean_adjacency(edge_index, N_NODES)
    raw_params = init_params(k_params, IN_CH, HIDDEN, num_layers=3)
    kparams = fold_params(raw_params)

    fwd = jax.jit(graphsage_link_predictor)
    logits = fwd(a_norm, x, edge_pairs, kparams)
    jax.block_until_ready(logits)

    assert logits.shape == (N_PAIRS,)
    assert bool(jnp.all(jnp.isfinite(logits)))

    # end-to-end tolerance vs f32 reference (bf16 MXU quantization is the only delta)
    ref = reference_forward(a_norm, x, edge_pairs, raw_params)
    max_err = float(jnp.max(jnp.abs(logits - ref)))
    ref_scale = float(jnp.max(jnp.abs(ref)))
    assert max_err <= 0.05 * ref_scale + 0.1, (max_err, ref_scale)

    print("KERNEL_OK")
</pallas_src>

<mosaic_0001>
module attributes {stable_mosaic.version = 11 : i64} {
  func.func @fused_forward_kernel(%arg0: memref<32x1xi32, #tpu.memory_space<vmem>>, %arg1: memref<64x64xbf16, #tpu.memory_space<vmem>>, %arg2: memref<64x16xbf16, #tpu.memory_space<vmem>>, %arg3: memref<16x128xbf16, #tpu.memory_space<vmem>>, %arg4: memref<16x256xbf16, #tpu.memory_space<vmem>>, %arg5: memref<1x128xf32, #tpu.memory_space<vmem>>, %arg6: memref<1x128xf32, #tpu.memory_space<vmem>>, %arg7: memref<1x128xf32, #tpu.memory_space<vmem>>, %arg8: memref<128x384xbf16, #tpu.memory_space<vmem>>, %arg9: memref<1x128xf32, #tpu.memory_space<vmem>>, %arg10: memref<1x128xf32, #tpu.memory_space<vmem>>, %arg11: memref<1x128xf32, #tpu.memory_space<vmem>>, %arg12: memref<128x384xbf16, #tpu.memory_space<vmem>>, %arg13: memref<1x128xf32, #tpu.memory_space<vmem>>, %arg14: memref<1x128xf32, #tpu.memory_space<vmem>>, %arg15: memref<1x128xf32, #tpu.memory_space<vmem>>, %arg16: memref<256x256xbf16, #tpu.memory_space<vmem>>, %arg17: memref<4x256xf32, #tpu.memory_space<vmem>>, %arg18: memref<1x256xf32, #tpu.memory_space<vmem>>, %arg19: memref<1x256xf32, #tpu.memory_space<vmem>>, %arg20: memref<256x128xbf16, #tpu.memory_space<vmem>>, %arg21: memref<1x128xf32, #tpu.memory_space<vmem>>, %arg22: memref<1x128xf32, #tpu.memory_space<vmem>>, %arg23: memref<128x64xbf16, #tpu.memory_space<vmem>>, %arg24: memref<1x64xf32, #tpu.memory_space<vmem>>, %arg25: memref<1x64xf32, #tpu.memory_space<vmem>>, %arg26: memref<1x64xf32, #tpu.memory_space<vmem>>, %arg27: memref<1x1xf32, #tpu.memory_space<vmem>>, %arg28: memref<16x1xf32, #tpu.memory_space<vmem>>) attributes {dimension_semantics = [], scalar_prefetch = 0 : i64, scratch_operands = 0 : i64, tpu.core_type = #tpu.core_type<tc>} {
    %c0 = arith.constant 0 : index
    %c0_0 = arith.constant 0 : index
    %0 = vector.load %arg1[%c0, %c0_0] : memref<64x64xbf16, #tpu.memory_space<vmem>>, vector<64x64xbf16>
    %c0_1 = arith.constant 0 : index
    %c0_2 = arith.constant 0 : index
    %1 = vector.load %arg2[%c0_1, %c0_2] : memref<64x16xbf16, #tpu.memory_space<vmem>>, vector<64x16xbf16>
    %cst = arith.constant dense<0.000000e+00> : vector<64x16xf32>
    %2 = tpu.matmul %0, %1, %cst {dimension_numbers = #tpu.dot_dimension_numbers<[1], [0], [0], [1], [0, 0, 1, 1], [], []>} : vector<64x64xbf16>, vector<64x16xbf16>, vector<64x16xf32> -> vector<64x16xf32>
    %c0_3 = arith.constant 0 : index
    %c0_4 = arith.constant 0 : index
    %3 = vector.load %arg4[%c0_3, %c0_4] : memref<16x256xbf16, #tpu.memory_space<vmem>>, vector<16x256xbf16>
    %cst_5 = arith.constant dense<0.000000e+00> : vector<64x256xf32>
    %4 = tpu.matmul %1, %3, %cst_5 {dimension_numbers = #tpu.dot_dimension_numbers<[1], [0], [0], [1], [0, 0, 1, 1], [], []>} : vector<64x16xbf16>, vector<16x256xbf16>, vector<64x256xf32> -> vector<64x256xf32>
    %5 = arith.truncf %2 : vector<64x16xf32> to vector<64x16xbf16>
    %c0_6 = arith.constant 0 : index
    %c0_7 = arith.constant 0 : index
    %6 = vector.load %arg3[%c0_6, %c0_7] : memref<16x128xbf16, #tpu.memory_space<vmem>>, vector<16x128xbf16>
    %cst_8 = arith.constant dense<0.000000e+00> : vector<64x128xf32>
    %7 = tpu.matmul %5, %6, %cst_8 {dimension_numbers = #tpu.dot_dimension_numbers<[1], [0], [0], [1], [0, 0, 1, 1], [], []>} : vector<64x16xbf16>, vector<16x128xbf16>, vector<64x128xf32> -> vector<64x128xf32>
    %8 = vector.extract_strided_slice %4 {offsets = [0, 0], sizes = [64, 128], strides = [1, 1]} : vector<64x256xf32> to vector<64x128xf32>
    %9 = arith.addf %7, %8 : vector<64x128xf32>
    %c0_9 = arith.constant 0 : index
    %c0_10 = arith.constant 0 : index
    %10 = vector.load %arg5[%c0_9, %c0_10] : memref<1x128xf32, #tpu.memory_space<vmem>>, vector<1x128xf32>
    %11 = vector.broadcast %10 : vector<1x128xf32> to vector<64x128xf32>
    %12 = arith.mulf %9, %11 : vector<64x128xf32>
    %c0_11 = arith.constant 0 : index
    %c0_12 = arith.constant 0 : index
    %13 = vector.load %arg6[%c0_11, %c0_12] : memref<1x128xf32, #tpu.memory_space<vmem>>, vector<1x128xf32>
    %14 = vector.broadcast %13 : vector<1x128xf32> to vector<64x128xf32>
    %15 = arith.addf %12, %14 : vector<64x128xf32>
    %cst_13 = arith.constant 0.000000e+00 : f32
    %16 = vector.broadcast %cst_13 : f32 to vector<64x128xf32>
    %17 = arith.maximumf %15, %16 : vector<64x128xf32>
    %18 = vector.extract_strided_slice %4 {offsets = [0, 128], sizes = [64, 128], strides = [1, 1]} : vector<64x256xf32> to vector<64x128xf32>
    %19 = arith.addf %17, %18 : vector<64x128xf32>
    %c0_14 = arith.constant 0 : index
    %c0_15 = arith.constant 0 : index
    %20 = vector.load %arg7[%c0_14, %c0_15] : memref<1x128xf32, #tpu.memory_space<vmem>>, vector<1x128xf32>
    %21 = vector.broadcast %20 : vector<1x128xf32> to vector<64x128xf32>
    %22 = arith.addf %19, %21 : vector<64x128xf32>
    %23 = arith.truncf %22 : vector<64x128xf32> to vector<64x128xbf16>
    %c0_16 = arith.constant 0 : index
    %c0_17 = arith.constant 0 : index
    %24 = vector.load %arg8[%c0_16, %c0_17] : memref<128x384xbf16, #tpu.memory_space<vmem>>, vector<128x384xbf16>
    %cst_18 = arith.constant dense<0.000000e+00> : vector<64x384xf32>
    %25 = tpu.matmul %23, %24, %cst_18 {dimension_numbers = #tpu.dot_dimension_numbers<[1], [0], [0], [1], [0, 0, 1, 1], [], []>} : vector<64x128xbf16>, vector<128x384xbf16>, vector<64x384xf32> -> vector<64x384xf32>
    %26 = vector.extract_strided_slice %25 {offsets = [0, 0], sizes = [64, 128], strides = [1, 1]} : vector<64x384xf32> to vector<64x128xf32>
    %27 = arith.truncf %26 : vector<64x128xf32> to vector<64x128xbf16>
    %cst_19 = arith.constant dense<0.000000e+00> : vector<64x128xf32>
    %28 = tpu.matmul %0, %27, %cst_19 {dimension_numbers = #tpu.dot_dimension_numbers<[1], [0], [0], [1], [0, 0, 1, 1], [], []>} : vector<64x64xbf16>, vector<64x128xbf16>, vector<64x128xf32> -> vector<64x128xf32>
    %29 = vector.extract_strided_slice %25 {offsets = [0, 128], sizes = [64, 128], strides = [1, 1]} : vector<64x384xf32> to vector<64x128xf32>
    %30 = arith.addf %28, %29 : vector<64x128xf32>
    %c0_20 = arith.constant 0 : index
    %c0_21 = arith.constant 0 : index
    %31 = vector.load %arg9[%c0_20, %c0_21] : memref<1x128xf32, #tpu.memory_space<vmem>>, vector<1x128xf32>
    %32 = vector.broadcast %31 : vector<1x128xf32> to vector<64x128xf32>
    %33 = arith.mulf %30, %32 : vector<64x128xf32>
    %c0_22 = arith.constant 0 : index
    %c0_23 = arith.constant 0 : index
    %34 = vector.load %arg10[%c0_22, %c0_23] : memref<1x128xf32, #tpu.memory_space<vmem>>, vector<1x128xf32>
    %35 = vector.broadcast %34 : vector<1x128xf32> to vector<64x128xf32>
    %36 = arith.addf %33, %35 : vector<64x128xf32>
    %cst_24 = arith.constant 0.000000e+00 : f32
    %37 = vector.broadcast %cst_24 : f32 to vector<64x128xf32>
    %38 = arith.maximumf %36, %37 : vector<64x128xf32>
    %39 = vector.extract_strided_slice %25 {offsets = [0, 256], sizes = [64, 128], strides = [1, 1]} : vector<64x384xf32> to vector<64x128xf32>
    %40 = arith.addf %38, %39 : vector<64x128xf32>
    %c0_25 = arith.constant 0 : index
    %c0_26 = arith.constant 0 : index
    %41 = vector.load %arg11[%c0_25, %c0_26] : memref<1x128xf32, #tpu.memory_space<vmem>>, vector<1x128xf32>
    %42 = vector.broadcast %41 : vector<1x128xf32> to vector<64x128xf32>
    %43 = arith.addf %40, %42 : vector<64x128xf32>
    %44 = arith.truncf %43 : vector<64x128xf32> to vector<64x128xbf16>
    %c0_27 = arith.constant 0 : index
    %c0_28 = arith.constant 0 : index
    %45 = vector.load %arg12[%c0_27, %c0_28] : memref<128x384xbf16, #tpu.memory_space<vmem>>, vector<128x384xbf16>
    %cst_29 = arith.constant dense<0.000000e+00> : vector<64x384xf32>
    %46 = tpu.matmul %44, %45, %cst_29 {dimension_numbers = #tpu.dot_dimension_numbers<[1], [0], [0], [1], [0, 0, 1, 1], [], []>} : vector<64x128xbf16>, vector<128x384xbf16>, vector<64x384xf32> -> vector<64x384xf32>
    %47 = vector.extract_strided_slice %46 {offsets = [0, 0], sizes = [64, 128], strides = [1, 1]} : vector<64x384xf32> to vector<64x128xf32>
    %48 = arith.truncf %47 : vector<64x128xf32> to vector<64x128xbf16>
    %cst_30 = arith.constant dense<0.000000e+00> : vector<64x128xf32>
    %49 = tpu.matmul %0, %48, %cst_30 {dimension_numbers = #tpu.dot_dimension_numbers<[1], [0], [0], [1], [0, 0, 1, 1], [], []>} : vector<64x64xbf16>, vector<64x128xbf16>, vector<64x128xf32> -> vector<64x128xf32>
    %50 = vector.extract_strided_slice %46 {offsets = [0, 128], sizes = [64, 128], strides = [1, 1]} : vector<64x384xf32> to vector<64x128xf32>
    %51 = arith.addf %49, %50 : vector<64x128xf32>
    %c0_31 = arith.constant 0 : index
    %c0_32 = arith.constant 0 : index
    %52 = vector.load %arg13[%c0_31, %c0_32] : memref<1x128xf32, #tpu.memory_space<vmem>>, vector<1x128xf32>
    %53 = vector.broadcast %52 : vector<1x128xf32> to vector<64x128xf32>
    %54 = arith.mulf %51, %53 : vector<64x128xf32>
    %c0_33 = arith.constant 0 : index
    %c0_34 = arith.constant 0 : index
    %55 = vector.load %arg14[%c0_33, %c0_34] : memref<1x128xf32, #tpu.memory_space<vmem>>, vector<1x128xf32>
    %56 = vector.broadcast %55 : vector<1x128xf32> to vector<64x128xf32>
    %57 = arith.addf %54, %56 : vector<64x128xf32>
    %cst_35 = arith.constant 0.000000e+00 : f32
    %58 = vector.broadcast %cst_35 : f32 to vector<64x128xf32>
    %59 = arith.maximumf %57, %58 : vector<64x128xf32>
    %60 = vector.extract_strided_slice %46 {offsets = [0, 256], sizes = [64, 128], strides = [1, 1]} : vector<64x384xf32> to vector<64x128xf32>
    %61 = arith.addf %59, %60 : vector<64x128xf32>
    %c0_36 = arith.constant 0 : index
    %c0_37 = arith.constant 0 : index
    %62 = vector.load %arg15[%c0_36, %c0_37] : memref<1x128xf32, #tpu.memory_space<vmem>>, vector<1x128xf32>
    %63 = vector.broadcast %62 : vector<1x128xf32> to vector<64x128xf32>
    %64 = arith.addf %61, %63 : vector<64x128xf32>
    %65 = arith.truncf %64 : vector<64x128xf32> to vector<64x128xbf16>
    %66 = tpu.iota {dimensions = array<i32: 1>} : vector<32x64xi32>
    %c0_38 = arith.constant 0 : index
    %c0_39 = arith.constant 0 : index
    %67 = vector.load %arg0[%c0_38, %c0_39] : memref<32x1xi32, #tpu.memory_space<vmem>>, vector<32x1xi32>
    %68 = vector.broadcast %67 : vector<32x1xi32> to vector<32x64xi32>
    %69 = arith.cmpi eq, %66, %68 : vector<32x64xi32>
    %70 = arith.extui %69 : vector<32x64xi1> to vector<32x64xi32>
    %71 = arith.sitofp %70 : vector<32x64xi32> to vector<32x64xf32>
    %72 = arith.truncf %71 : vector<32x64xf32> to vector<32x64xbf16>
    %cst_40 = arith.constant dense<0.000000e+00> : vector<32x128xf32>
    %73 = tpu.matmul %72, %65, %cst_40 {dimension_numbers = #tpu.dot_dimension_numbers<[1], [0], [0], [1], [0, 0, 1, 1], [], []>} : vector<32x64xbf16>, vector<64x128xbf16>, vector<32x128xf32> -> vector<32x128xf32>
    %74 = vector.extract_strided_slice %73 {offsets = [0, 0], sizes = [16, 128], strides = [1, 1]} : vector<32x128xf32> to vector<16x128xf32>
    %75 = vector.extract_strided_slice %73 {offsets = [16, 0], sizes = [16, 128], strides = [1, 1]} : vector<32x128xf32> to vector<16x128xf32>
    %76 = arith.mulf %74, %75 : vector<16x128xf32>
    %cst_41 = arith.constant dense<0.000000e+00> : vector<16xf32>
    %77 = vector.multi_reduction <add>, %76, %cst_41 [1] : vector<16x128xf32> to vector<16xf32>
    %78 = vector.shape_cast %77 : vector<16xf32> to vector<16x1xf32>
    %79 = arith.mulf %74, %74 : vector<16x128xf32>
    %cst_42 = arith.constant dense<0.000000e+00> : vector<16xf32>
    %80 = vector.multi_reduction <add>, %79, %cst_42 [1] : vector<16x128xf32> to vector<16xf32>
    %81 = vector.shape_cast %80 : vector<16xf32> to vector<16x1xf32>
    %82 = arith.mulf %75, %75 : vector<16x128xf32>
    %cst_43 = arith.constant dense<0.000000e+00> : vector<16xf32>
    %83 = vector.multi_reduction <add>, %82, %cst_43 [1] : vector<16x128xf32> to vector<16xf32>
    %84 = vector.shape_cast %83 : vector<16xf32> to vector<16x1xf32>
    %85 = arith.addf %81, %84 : vector<16x1xf32>
    %cst_44 = arith.constant 2.000000e+00 : f32
    %86 = vector.broadcast %cst_44 : f32 to vector<16x1xf32>
    %87 = arith.mulf %86, %78 : vector<16x1xf32>
    %88 = arith.subf %85, %87 : vector<16x1xf32>
    %cst_45 = arith.constant 0.000000e+00 : f32
    %89 = vector.broadcast %cst_45 : f32 to vector<16x1xf32>
    %90 = arith.maximumf %88, %89 : vector<16x1xf32>
    %91 = math.sqrt %90 : vector<16x1xf32>
    %92 = arith.subf %74, %75 : vector<16x128xf32>
    %93 = math.absf %92 : vector<16x128xf32>
    %cst_46 = arith.constant dense<0.000000e+00> : vector<16xf32>
    %94 = vector.multi_reduction <add>, %93, %cst_46 [1] : vector<16x128xf32> to vector<16xf32>
    %95 = vector.shape_cast %94 : vector<16xf32> to vector<16x1xf32>
    %96 = math.sqrt %81 : vector<16x1xf32>
    %cst_47 = arith.constant 9.99999993E-9 : f32
    %97 = vector.broadcast %cst_47 : f32 to vector<16x1xf32>
    %98 = arith.maximumf %96, %97 : vector<16x1xf32>
    %99 = math.sqrt %84 : vector<16x1xf32>
    %cst_48 = arith.constant 9.99999993E-9 : f32
    %100 = vector.broadcast %cst_48 : f32 to vector<16x1xf32>
    %101 = arith.maximumf %99, %100 : vector<16x1xf32>
    %102 = arith.mulf %98, %101 : vector<16x1xf32>
    %103 = arith.divf %78, %102 : vector<16x1xf32>
    %104 = tpu.concatenate %74, %75 in 1 : vector<16x128xf32>, vector<16x128xf32> -> vector<16x256xf32>
    %105 = arith.truncf %104 : vector<16x256xf32> to vector<16x256xbf16>
    %c0_49 = arith.constant 0 : index
    %c0_50 = arith.constant 0 : index
    %106 = vector.load %arg17[%c0_49, %c0_50] : memref<4x256xf32, #tpu.memory_space<vmem>>, vector<4x256xf32>
    %c0_51 = arith.constant 0 : index
    %c0_52 = arith.constant 0 : index
    %107 = vector.load %arg16[%c0_51, %c0_52] : memref<256x256xbf16, #tpu.memory_space<vmem>>, vector<256x256xbf16>
    %cst_53 = arith.constant dense<0.000000e+00> : vector<16x256xf32>
    %108 = tpu.matmul %105, %107, %cst_53 {dimension_numbers = #tpu.dot_dimension_numbers<[1], [0], [0], [1], [0, 0, 1, 1], [], []>} : vector<16x256xbf16>, vector<256x256xbf16>, vector<16x256xf32> -> vector<16x256xf32>
    %109 = vector.extract_strided_slice %106 {offsets = [0, 0], sizes = [1, 256], strides = [1, 1]} : vector<4x256xf32> to vector<1x256xf32>
    %110 = vector.broadcast %78 : vector<16x1xf32> to vector<16x256xf32>
    %111 = vector.broadcast %109 : vector<1x256xf32> to vector<16x256xf32>
    %112 = arith.mulf %110, %111 : vector<16x256xf32>
    %113 = arith.addf %108, %112 : vector<16x256xf32>
    %114 = vector.extract_strided_slice %106 {offsets = [1, 0], sizes = [1, 256], strides = [1, 1]} : vector<4x256xf32> to vector<1x256xf32>
    %115 = vector.broadcast %91 : vector<16x1xf32> to vector<16x256xf32>
    %116 = vector.broadcast %114 : vector<1x256xf32> to vector<16x256xf32>
    %117 = arith.mulf %115, %116 : vector<16x256xf32>
    %118 = arith.addf %113, %117 : vector<16x256xf32>
    %119 = vector.extract_strided_slice %106 {offsets = [2, 0], sizes = [1, 256], strides = [1, 1]} : vector<4x256xf32> to vector<1x256xf32>
    %120 = vector.broadcast %95 : vector<16x1xf32> to vector<16x256xf32>
    %121 = vector.broadcast %119 : vector<1x256xf32> to vector<16x256xf32>
    %122 = arith.mulf %120, %121 : vector<16x256xf32>
    %123 = arith.addf %118, %122 : vector<16x256xf32>
    %124 = vector.extract_strided_slice %106 {offsets = [3, 0], sizes = [1, 256], strides = [1, 1]} : vector<4x256xf32> to vector<1x256xf32>
    %125 = vector.broadcast %103 : vector<16x1xf32> to vector<16x256xf32>
    %126 = vector.broadcast %124 : vector<1x256xf32> to vector<16x256xf32>
    %127 = arith.mulf %125, %126 : vector<16x256xf32>
    %128 = arith.addf %123, %127 : vector<16x256xf32>
    %c0_54 = arith.constant 0 : index
    %c0_55 = arith.constant 0 : index
    %129 = vector.load %arg18[%c0_54, %c0_55] : memref<1x256xf32, #tpu.memory_space<vmem>>, vector<1x256xf32>
    %130 = vector.broadcast %129 : vector<1x256xf32> to vector<16x256xf32>
    %131 = arith.mulf %128, %130 : vector<16x256xf32>
    %c0_56 = arith.constant 0 : index
    %c0_57 = arith.constant 0 : index
    %132 = vector.load %arg19[%c0_56, %c0_57] : memref<1x256xf32, #tpu.memory_space<vmem>>, vector<1x256xf32>
    %133 = vector.broadcast %132 : vector<1x256xf32> to vector<16x256xf32>
    %134 = arith.addf %131, %133 : vector<16x256xf32>
    %cst_58 = arith.constant 0.000000e+00 : f32
    %135 = vector.broadcast %cst_58 : f32 to vector<16x256xf32>
    %136 = arith.maximumf %134, %135 : vector<16x256xf32>
    %137 = arith.truncf %136 : vector<16x256xf32> to vector<16x256xbf16>
    %c0_59 = arith.constant 0 : index
    %c0_60 = arith.constant 0 : index
    %138 = vector.load %arg20[%c0_59, %c0_60] : memref<256x128xbf16, #tpu.memory_space<vmem>>, vector<256x128xbf16>
    %cst_61 = arith.constant dense<0.000000e+00> : vector<16x128xf32>
    %139 = tpu.matmul %137, %138, %cst_61 {dimension_numbers = #tpu.dot_dimension_numbers<[1], [0], [0], [1], [0, 0, 1, 1], [], []>} : vector<16x256xbf16>, vector<256x128xbf16>, vector<16x128xf32> -> vector<16x128xf32>
    %c0_62 = arith.constant 0 : index
    %c0_63 = arith.constant 0 : index
    %140 = vector.load %arg21[%c0_62, %c0_63] : memref<1x128xf32, #tpu.memory_space<vmem>>, vector<1x128xf32>
    %141 = vector.broadcast %140 : vector<1x128xf32> to vector<16x128xf32>
    %142 = arith.mulf %139, %141 : vector<16x128xf32>
    %c0_64 = arith.constant 0 : index
    %c0_65 = arith.constant 0 : index
    %143 = vector.load %arg22[%c0_64, %c0_65] : memref<1x128xf32, #tpu.memory_space<vmem>>, vector<1x128xf32>
    %144 = vector.broadcast %143 : vector<1x128xf32> to vector<16x128xf32>
    %145 = arith.addf %142, %144 : vector<16x128xf32>
    %cst_66 = arith.constant 0.000000e+00 : f32
    %146 = vector.broadcast %cst_66 : f32 to vector<16x128xf32>
    %147 = arith.maximumf %145, %146 : vector<16x128xf32>
    %148 = arith.truncf %147 : vector<16x128xf32> to vector<16x128xbf16>
    %c0_67 = arith.constant 0 : index
    %c0_68 = arith.constant 0 : index
    %149 = vector.load %arg23[%c0_67, %c0_68] : memref<128x64xbf16, #tpu.memory_space<vmem>>, vector<128x64xbf16>
    %cst_69 = arith.constant dense<0.000000e+00> : vector<16x64xf32>
    %150 = tpu.matmul %148, %149, %cst_69 {dimension_numbers = #tpu.dot_dimension_numbers<[1], [0], [0], [1], [0, 0, 1, 1], [], []>} : vector<16x128xbf16>, vector<128x64xbf16>, vector<16x64xf32> -> vector<16x64xf32>
    %c0_70 = arith.constant 0 : index
    %c0_71 = arith.constant 0 : index
    %151 = vector.load %arg24[%c0_70, %c0_71] : memref<1x64xf32, #tpu.memory_space<vmem>>, vector<1x64xf32>
    %152 = vector.broadcast %151 : vector<1x64xf32> to vector<16x64xf32>
    %153 = arith.mulf %150, %152 : vector<16x64xf32>
    %c0_72 = arith.constant 0 : index
    %c0_73 = arith.constant 0 : index
    %154 = vector.load %arg25[%c0_72, %c0_73] : memref<1x64xf32, #tpu.memory_space<vmem>>, vector<1x64xf32>
    %155 = vector.broadcast %154 : vector<1x64xf32> to vector<16x64xf32>
    %156 = arith.addf %153, %155 : vector<16x64xf32>
    %cst_74 = arith.constant 0.000000e+00 : f32
    %157 = vector.broadcast %cst_74 : f32 to vector<16x64xf32>
    %158 = arith.maximumf %156, %157 : vector<16x64xf32>
    %c0_75 = arith.constant 0 : index
    %c0_76 = arith.constant 0 : index
    %159 = vector.load %arg26[%c0_75, %c0_76] : memref<1x64xf32, #tpu.memory_space<vmem>>, vector<1x64xf32>
    %160 = vector.broadcast %159 : vector<1x64xf32> to vector<16x64xf32>
    %161 = arith.mulf %158, %160 : vector<16x64xf32>
    %cst_77 = arith.constant dense<0.000000e+00> : vector<16xf32>
    %162 = vector.multi_reduction <add>, %161, %cst_77 [1] : vector<16x64xf32> to vector<16xf32>
    %163 = vector.shape_cast %162 : vector<16xf32> to vector<16x1xf32>
    %c0_78 = arith.constant 0 : index
    %c0_79 = arith.constant 0 : index
    %164 = vector.load %arg27[%c0_78, %c0_79] : memref<1x1xf32, #tpu.memory_space<vmem>>, vector<1x1xf32>
    %165 = vector.broadcast %164 : vector<1x1xf32> to vector<16x1xf32>
    %166 = arith.addf %163, %165 : vector<16x1xf32>
    %c0_80 = arith.constant 0 : index
    %c0_81 = arith.constant 0 : index
    %167 = vector.load %arg28[%c0_80, %c0_81] : memref<16x1xf32, #tpu.memory_space<vmem>>, vector<16x1xf32>
    tpu.vector_store %arg28[%c0_80, %c0_81], %166 {strides = array<i32>} : memref<16x1xf32, #tpu.memory_space<vmem>>, vector<16x1xf32>,
    return
  }
}

</mosaic_0001>

<llo_original>
// kernel: graphsage_link_predictor.1
$region0: #{graphsage_link_predictor.1}
  #allocation0 [shape = 'u32[]', space=smem, size = 0x4, offset = 0x4, fixed_abs, tag = 'smem constant byte address 0x4 - core index']
  #allocation1 [shape = 'u32[144,128]{1,0:T(1,128)}', space=vmem, size = 0x12000, scoped, tag = 'internal scratch']
  #allocation2 [shape = 'f32[1,1]{1,0:T(1,128)S(1)}', space=vmem, size = 0x200, scoped, tag = 'scoped memory for graphsage_link_predictor.1']
  %s0 = inlined_call_operand.vmem [shape: s32[32,1], index: 0, kind: input, shape index: {}]
  %s1 = inlined_call_operand.vmem [shape: bf16[64,64], index: 1, kind: input, shape index: {}]
  %s2 = inlined_call_operand.vmem [shape: bf16[64,16], index: 2, kind: input, shape index: {}]
  %s3 = inlined_call_operand.vmem [shape: bf16[16,128], index: 3, kind: input, shape index: {}]
  %s4 = inlined_call_operand.vmem [shape: bf16[16,256], index: 4, kind: input, shape index: {}]
  %s5 = inlined_call_operand.vmem [shape: f32[1,128], index: 5, kind: input, shape index: {}]
  %s6 = inlined_call_operand.vmem [shape: f32[1,128], index: 6, kind: input, shape index: {}]
  %s7 = inlined_call_operand.vmem [shape: f32[1,128], index: 7, kind: input, shape index: {}]
  %s8 = inlined_call_operand.hbm [shape: bf16[128,384], index: 8, kind: input, shape index: {}]
  %s9 = inlined_call_operand.vmem [shape: f32[1,128], index: 9, kind: input, shape index: {}]
  %s10 = inlined_call_operand.vmem [shape: f32[1,128], index: 10, kind: input, shape index: {}]
  %s11 = inlined_call_operand.vmem [shape: f32[1,128], index: 11, kind: input, shape index: {}]
  %s12 = inlined_call_operand.hbm [shape: bf16[128,384], index: 12, kind: input, shape index: {}]
  %s13 = inlined_call_operand.vmem [shape: f32[1,128], index: 13, kind: input, shape index: {}]
  %s14 = inlined_call_operand.vmem [shape: f32[1,128], index: 14, kind: input, shape index: {}]
  %s15 = inlined_call_operand.vmem [shape: f32[1,128], index: 15, kind: input, shape index: {}]
  %s16 = inlined_call_operand.vmem [shape: bf16[256,256], index: 16, kind: input, shape index: {}]
  %s17 = inlined_call_operand.vmem [shape: f32[4,256], index: 17, kind: input, shape index: {}]
  %s18 = inlined_call_operand.vmem [shape: f32[1,256], index: 18, kind: input, shape index: {}]
  %s19 = inlined_call_operand.vmem [shape: f32[1,256], index: 19, kind: input, shape index: {}]
  %s20 = inlined_call_operand.hbm [shape: bf16[256,128], index: 20, kind: input, shape index: {}]
  %s21 = inlined_call_operand.vmem [shape: f32[1,128], index: 21, kind: input, shape index: {}]
  %s22 = inlined_call_operand.vmem [shape: f32[1,128], index: 22, kind: input, shape index: {}]
  %s23 = inlined_call_operand.vmem [shape: bf16[128,64], index: 23, kind: input, shape index: {}]
  %s24 = inlined_call_operand.hbm [shape: f32[1,64], index: 24, kind: input, shape index: {}]
  %s25 = inlined_call_operand.hbm [shape: f32[1,64], index: 25, kind: input, shape index: {}]
  %s26 = inlined_call_operand.vmem [shape: f32[1,64], index: 26, kind: input, shape index: {}]
  %s27 = inlined_call_operand.<no memory space> [shape: f32[1,1], index: 27, kind: input, shape index: {}]
  %s28 = inlined_call_operand.vmem [shape: f32[16,1], index: 28, kind: output, shape index: {}]
  %s29 = sld [smem:[#allocation0]]
  $region142: #{graphsage_link_predictor.1} parent=0
    _
  %s31 = ssub.s32 1, %s29
  %s32 = scalar_select 0, %s31, %s29
  %v33 = vstv %s27
  %34 = vst [vmem:[#allocation2] sm:$0x1] %v33
  $region1: #{graphsage_link_predictor.1} parent=0
    #allocation3 [shape = 'u8[98304]{0}', space=vmem, size = 0x18000, scoped, tag = 'input window, operand 8, single buffered']
    #allocation4 [shape = 's32[1]{0}', space=sflag, size = 0x4, scoped, tag = 'scoped memory for graphsage_link_predictor.1']
    #allocation5 [shape = 'u8[98304]{0}', space=vmem, size = 0x18000, scoped, tag = 'input window, operand 12, single buffered']
    #allocation6 [shape = 's32[1]{0}', space=sflag, size = 0x4, scoped, tag = 'scoped memory for graphsage_link_predictor.1']
    #allocation7 [shape = 'u8[65536]{0}', space=vmem, size = 0x10000, scoped, tag = 'input window, operand 20, single buffered']
    #allocation8 [shape = 'u8[512]{0}', space=vmem, size = 0x400, scoped, tag = 'input window, operand 24, single buffered']
    #allocation9 [shape = 's32[1]{0}', space=sflag, size = 0x4, scoped, tag = 'scoped memory for graphsage_link_predictor.1']
    #allocation10 [shape = 'u8[512]{0}', space=vmem, size = 0x400, scoped, tag = 'input window, operand 25, single buffered']
    %35 = vsyncpa [#allocation4], 0
    %36 = vsyncpa [#allocation6], 0
    %37 = vsyncpa [#allocation9], 0
    // Predicated region
    $region2: #{graphsage_link_predictor.1} parent=1 // pred_check
      _
    $region3: #{graphsage_link_predictor.1} parent=1 // pred_check_branch
      %39 = sbr.rel (0) target = $region5
    $region4: #{graphsage_link_predictor.1} parent=1 // pred_region
      _
    $region5: #{graphsage_link_predictor.1} parent=1 // pred_fallthru
      _
    // Predicated region
    $region6: #{graphsage_link_predictor.1} parent=1 // pred_check
      _
    $region7: #{graphsage_link_predictor.1} parent=1 // pred_check_branch
      %41 = sbr.rel (0) target = $region9
    $region8: #{graphsage_link_predictor.1} parent=1 // pred_region
      _
    $region9: #{graphsage_link_predictor.1} parent=1 // pred_fallthru
      _
    // Predicated region
    $region10: #{graphsage_link_predictor.1} parent=1 // pred_check
      _
    $region11: #{graphsage_link_predictor.1} parent=1 // pred_check_branch
      %43 = sbr.rel (0) target = $region13
    $region12: #{graphsage_link_predictor.1} parent=1 // pred_region
      _
    $region13: #{graphsage_link_predictor.1} parent=1 // pred_fallthru
      _
    // Predicated region
    $region14: #{graphsage_link_predictor.1} parent=1 // pred_check
      _
    $region15: #{graphsage_link_predictor.1} parent=1 // pred_check_branch
      %45 = sbr.rel (0) target = $region17
    $region16: #{graphsage_link_predictor.1} parent=1 // pred_region
      _
    $region17: #{graphsage_link_predictor.1} parent=1 // pred_fallthru
      _
    // Predicated region
    $region18: #{graphsage_link_predictor.1} parent=1 // pred_check
      _
    $region19: #{graphsage_link_predictor.1} parent=1 // pred_check_branch
      %47 = sbr.rel (0) target = $region21
    $region20: #{graphsage_link_predictor.1} parent=1 // pred_region
      _
    $region21: #{graphsage_link_predictor.1} parent=1 // pred_fallthru
      _
    // Predicated region
    $region22: #{graphsage_link_predictor.1} parent=1 // pred_check
      _
    $region23: #{graphsage_link_predictor.1} parent=1 // pred_check_branch
      %49 = sbr.rel (0) target = $region25
    $region24: #{graphsage_link_predictor.1} parent=1 // pred_region
      _
    $region25: #{graphsage_link_predictor.1} parent=1 // pred_fallthru
      _
    // Predicated region
    $region26: #{graphsage_link_predictor.1} parent=1 // pred_check
      _
    $region27: #{graphsage_link_predictor.1} parent=1 // pred_check_branch
      %51 = sbr.rel (0) target = $region29
    $region28: #{graphsage_link_predictor.1} parent=1 // pred_region
      _
    $region29: #{graphsage_link_predictor.1} parent=1 // pred_fallthru
      _
    // Predicated region
    $region30: #{graphsage_link_predictor.1} parent=1 // pred_check
      _
    $region31: #{graphsage_link_predictor.1} parent=1 // pred_check_branch
      %53 = sbr.rel (0) target = $region33
    $region32: #{graphsage_link_predictor.1} parent=1 // pred_region
      _
    $region33: #{graphsage_link_predictor.1} parent=1 // pred_fallthru
      _
    // Predicated region
    $region34: #{graphsage_link_predictor.1} parent=1 // pred_check
      _
    $region35: #{graphsage_link_predictor.1} parent=1 // pred_check_branch
      %55 = sbr.rel (0) target = $region37
    $region36: #{graphsage_link_predictor.1} parent=1 // pred_region
      %s57 = ssub.s32 3072, 3072
      %58 = vsyncadd [#allocation4], %s57
      %s59 = sshll.u32 [#allocation3], 4
      %s60 = int_to_ptr.vmem [resolvable:$true] %s59
      %65 = dma.hbm_to_vmem [thread:$0]  %s8, 3072, %s60, [#allocation4], 192, 192, 12
    $region37: #{graphsage_link_predictor.1} parent=1 // pred_fallthru
      _
    // Predicated region
    $region38: #{graphsage_link_predictor.1} parent=1 // pred_check
      _
    $region39: #{graphsage_link_predictor.1} parent=1 // pred_check_branch
      %67 = sbr.rel (0) target = $region41
    $region40: #{graphsage_link_predictor.1} parent=1 // pred_region
      _
    $region41: #{graphsage_link_predictor.1} parent=1 // pred_fallthru
      _
    // Predicated region
    $region42: #{graphsage_link_predictor.1} parent=1 // pred_check
      _
    $region43: #{graphsage_link_predictor.1} parent=1 // pred_check_branch
      %69 = sbr.rel (0) target = $region45
    $region44: #{graphsage_link_predictor.1} parent=1 // pred_region
      _
    $region45: #{graphsage_link_predictor.1} parent=1 // pred_fallthru
      _
    // Predicated region
    $region46: #{graphsage_link_predictor.1} parent=1 // pred_check
      _
    $region47: #{graphsage_link_predictor.1} parent=1 // pred_check_branch
      %71 = sbr.rel (0) target = $region49
    $region48: #{graphsage_link_predictor.1} parent=1 // pred_region
      _
    $region49: #{graphsage_link_predictor.1} parent=1 // pred_fallthru
      _
    // Predicated region
    $region50: #{graphsage_link_predictor.1} parent=1 // pred_check
      _
    $region51: #{graphsage_link_predictor.1} parent=1 // pred_check_branch
      %73 = sbr.rel (0) target = $region53
    $region52: #{graphsage_link_predictor.1} parent=1 // pred_region
      %s75 = ssub.s32 3072, 3072
      %76 = vsyncadd [#allocation6], %s75
      %s77 = sshll.u32 [#allocation5], 4
      %s78 = int_to_ptr.vmem [resolvable:$true] %s77
      %83 = dma.hbm_to_vmem [thread:$0]  %s12, 3072, %s78, [#allocation6], 192, 192, 12
    $region53: #{graphsage_link_predictor.1} parent=1 // pred_fallthru
      _
    // Predicated region
    $region54: #{graphsage_link_predictor.1} parent=1 // pred_check
      _
    $region55: #{graphsage_link_predictor.1} parent=1 // pred_check_branch
      %85 = sbr.rel (0) target = $region57
    $region56: #{graphsage_link_predictor.1} parent=1 // pred_region
      _
    $region57: #{graphsage_link_predictor.1} parent=1 // pred_fallthru
      _
    // Predicated region
    $region58: #{graphsage_link_predictor.1} parent=1 // pred_check
      _
    $region59: #{graphsage_link_predictor.1} parent=1 // pred_check_branch
      %87 = sbr.rel (0) target = $region61
    $region60: #{graphsage_link_predictor.1} parent=1 // pred_region
      _
    $region61: #{graphsage_link_predictor.1} parent=1 // pred_fallthru
      _
    // Predicated region
    $region62: #{graphsage_link_predictor.1} parent=1 // pred_check
      _
    $region63: #{graphsage_link_predictor.1} parent=1 // pred_check_branch
      %89 = sbr.rel (0) target = $region65
    $region64: #{graphsage_link_predictor.1} parent=1 // pred_region
      _
    $region65: #{graphsage_link_predictor.1} parent=1 // pred_fallthru
      _
    // Predicated region
    $region66: #{graphsage_link_predictor.1} parent=1 // pred_check
      _
    $region67: #{graphsage_link_predictor.1} parent=1 // pred_check_branch
      %91 = sbr.rel (0) target = $region69
    $region68: #{graphsage_link_predictor.1} parent=1 // pred_region
      _
    $region69: #{graphsage_link_predictor.1} parent=1 // pred_fallthru
      _
    // Predicated region
    $region70: #{graphsage_link_predictor.1} parent=1 // pred_check
      _
    $region71: #{graphsage_link_predictor.1} parent=1 // pred_check_branch
      %93 = sbr.rel (0) target = $region73
    $region72: #{graphsage_link_predictor.1} parent=1 // pred_region
      _
    $region73: #{graphsage_link_predictor.1} parent=1 // pred_fallthru
      _
    // Predicated region
    $region74: #{graphsage_link_predictor.1} parent=1 // pred_check
      _
    $region75: #{graphsage_link_predictor.1} parent=1 // pred_check_branch
      %95 = sbr.rel (0) target = $region77
    $region76: #{graphsage_link_predictor.1} parent=1 // pred_region
      _
    $region77: #{graphsage_link_predictor.1} parent=1 // pred_fallthru
      _
    // Predicated region
    $region78: #{graphsage_link_predictor.1} parent=1 // pred_check
      _
    $region79: #{graphsage_link_predictor.1} parent=1 // pred_check_branch
      %97 = sbr.rel (0) target = $region81
    $region80: #{graphsage_link_predictor.1} parent=1 // pred_region
      _
    $region81: #{graphsage_link_predictor.1} parent=1 // pred_fallthru
      _
    // Predicated region
    $region82: #{graphsage_link_predictor.1} parent=1 // pred_check
      _
    $region83: #{graphsage_link_predictor.1} parent=1 // pred_check_branch
      %99 = sbr.rel (0) target = $region85
    $region84: #{graphsage_link_predictor.1} parent=1 // pred_region
      %s101 = ssub.s32 2048, 2048
      %102 = vsyncadd [#allocation6], %s101
      %s103 = sshll.u32 [#allocation7], 4
      %s104 = int_to_ptr.vmem [resolvable:$true] %s103
      %109 = dma.hbm_to_vmem [thread:$0]  %s20, 2048, %s104, [#allocation6], 64, 64, 4
    $region85: #{graphsage_link_predictor.1} parent=1 // pred_fallthru
      _
    // Predicated region
    $region86: #{graphsage_link_predictor.1} parent=1 // pred_check
      _
    $region87: #{graphsage_link_predictor.1} parent=1 // pred_check_branch
      %111 = sbr.rel (0) target = $region89
    $region88: #{graphsage_link_predictor.1} parent=1 // pred_region
      _
    $region89: #{graphsage_link_predictor.1} parent=1 // pred_fallthru
      _
    // Predicated region
    $region90: #{graphsage_link_predictor.1} parent=1 // pred_check
      _
    $region91: #{graphsage_link_predictor.1} parent=1 // pred_check_branch
      %113 = sbr.rel (0) target = $region93
    $region92: #{graphsage_link_predictor.1} parent=1 // pred_region
      _
    $region93: #{graphsage_link_predictor.1} parent=1 // pred_fallthru
      _
    // Predicated region
    $region94: #{graphsage_link_predictor.1} parent=1 // pred_check
      _
    $region95: #{graphsage_link_predictor.1} parent=1 // pred_check_branch
      %115 = sbr.rel (0) target = $region97
    $region96: #{graphsage_link_predictor.1} parent=1 // pred_region
      _
    $region97: #{graphsage_link_predictor.1} parent=1 // pred_fallthru
      _
    // Predicated region
    $region98: #{graphsage_link_predictor.1} parent=1 // pred_check
      _
    $region99: #{graphsage_link_predictor.1} parent=1 // pred_check_branch
      %117 = sbr.rel (0) target = $region101
    $region100: #{graphsage_link_predictor.1} parent=1 // pred_region
      %s119 = ssub.s32 16, 16
      %120 = vsyncadd [#allocation9], %s119
      %s122 = sshll.u32 [#allocation8], 4
      %s123 = int_to_ptr.vmem [resolvable:$true] %s122
      %125 = dma.hbm_to_vmem [thread:$0]  %s24, 16, %s123, [#allocation9]
    $region101: #{graphsage_link_predictor.1} parent=1 // pred_fallthru
      _
    // Predicated region
    $region102: #{graphsage_link_predictor.1} parent=1 // pred_check
      _
    $region103: #{graphsage_link_predictor.1} parent=1 // pred_check_branch
      %127 = sbr.rel (0) target = $region105
    $region104: #{graphsage_link_predictor.1} parent=1 // pred_region
      %s129 = ssub.s32 16, 16
      %130 = vsyncadd [#allocation9], %s129
      %s132 = sshll.u32 [#allocation10], 4
      %s133 = int_to_ptr.vmem [resolvable:$true] %s132
      %135 = dma.hbm_to_vmem [thread:$0]  %s25, 16, %s133, [#allocation9]
    $region105: #{graphsage_link_predictor.1} parent=1 // pred_fallthru
      _
    // Predicated region
    $region106: #{graphsage_link_predictor.1} parent=1 // pred_check
      _
    $region107: #{graphsage_link_predictor.1} parent=1 // pred_check_branch
      %137 = sbr.rel (0) target = $region109
    $region108: #{graphsage_link_predictor.1} parent=1 // pred_region
      _
    $region109: #{graphsage_link_predictor.1} parent=1 // pred_fallthru
      _
    // Predicated region
    $region110: #{graphsage_link_predictor.1} parent=1 // pred_check
      _
    $region111: #{graphsage_link_predictor.1} parent=1 // pred_check_branch
      %139 = sbr.rel (0) target = $region113
    $region112: #{graphsage_link_predictor.1} parent=1 // pred_region
      _
    $region113: #{graphsage_link_predictor.1} parent=1 // pred_fallthru
      _
    // Predicated region
    $region114: #{graphsage_link_predictor.1} parent=1 // pred_check
      _
    $region115: #{graphsage_link_predictor.1} parent=1 // pred_check_branch
      %141 = sbr.rel (0) target = $region117
    $region116: #{graphsage_link_predictor.1} parent=1 // pred_region
      %142 = dma.done [#allocation4], 3072
    $region117: #{graphsage_link_predictor.1} parent=1 // pred_fallthru
      _
    // Predicated region
    $region118: #{graphsage_link_predictor.1} parent=1 // pred_check
      _
    $region119: #{graphsage_link_predictor.1} parent=1 // pred_check_branch
      %144 = sbr.rel (0) target = $region121
    $region120: #{graphsage_link_predictor.1} parent=1 // pred_region
      %145 = dma.done [#allocation6], 3072
    $region121: #{graphsage_link_predictor.1} parent=1 // pred_fallthru
      _
    // Predicated region
    $region122: #{graphsage_link_predictor.1} parent=1 // pred_check
      _
    $region123: #{graphsage_link_predictor.1} parent=1 // pred_check_branch
      %147 = sbr.rel (0) target = $region125
    $region124: #{graphsage_link_predictor.1} parent=1 // pred_region
      %148 = dma.done [#allocation6], 2048
    $region125: #{graphsage_link_predictor.1} parent=1 // pred_fallthru
      _
    // Predicated region
    $region126: #{graphsage_link_predictor.1} parent=1 // pred_check
      _
    $region127: #{graphsage_link_predictor.1} parent=1 // pred_check_branch
      %150 = sbr.rel (0) target = $region129
    $region128: #{graphsage_link_predictor.1} parent=1 // pred_region
      %151 = dma.done [#allocation9], 16
    $region129: #{graphsage_link_predictor.1} parent=1 // pred_fallthru
      _
    // Predicated region
    $region130: #{graphsage_link_predictor.1} parent=1 // pred_check
      _
    $region131: #{graphsage_link_predictor.1} parent=1 // pred_check_branch
      %153 = sbr.rel (0) target = $region133
    $region132: #{graphsage_link_predictor.1} parent=1 // pred_region
      %154 = dma.done [#allocation9], 16
    $region133: #{graphsage_link_predictor.1} parent=1 // pred_fallthru
      _
    %v156 = vld [vmem:[%s1] sm:$0xf]
    %v157 = vld [vmem:[%s1 + $0x4] sm:$0xf]
    %v158 = vld [vmem:[%s1 + $0x8] sm:$0xf]
    %v159 = vld [vmem:[%s1 + $0xc] sm:$0xf]
    %v160 = vld [vmem:[%s1 + $0x10] sm:$0xf]
    %v161 = vld [vmem:[%s1 + $0x14] sm:$0xf]
    %v162 = vld [vmem:[%s1 + $0x18] sm:$0xf]
    %v163 = vld [vmem:[%s1 + $0x1c] sm:$0xf]
    %v164 = vld [vmem:[%s2] sm:$0xf]
    %v165 = vld [vmem:[%s2 + $0x4] sm:$0xf]
    %v166 = vld [vmem:[%s2 + $0x8] sm:$0xf]
    %v167 = vld [vmem:[%s2 + $0xc] sm:$0xf]
    %v168 = vld [vmem:[%s2 + $0x10] sm:$0xf]
    %v169 = vld [vmem:[%s2 + $0x14] sm:$0xf]
    %v170 = vld [vmem:[%s2 + $0x18] sm:$0xf]
    %v171 = vld [vmem:[%s2 + $0x1c] sm:$0xf]
    %v180 = vunpack.c.l.b16 %v156
    %v181 = vunpack.c.l.b16 %v157
    %v182 = vunpack.c.l.b16 %v158
    %v183 = vunpack.c.l.b16 %v159
    %v184 = vunpack.c.l.b16 %v160
    %v185 = vunpack.c.l.b16 %v161
    %v186 = vunpack.c.l.b16 %v162
    %v187 = vunpack.c.l.b16 %v163
    %v188 = vpack.c.b16 %v181, %v180
    %v189 = vpack.c.b16 %v183, %v182
    %v190 = vpack.c.b16 %v185, %v184
    %v191 = vpack.c.b16 %v187, %v186
    %v200 = vunpack.c.l.b16 %v164
    %v201 = vunpack.c.l.b16 %v165
    %v202 = vunpack.c.l.b16 %v166
    %v203 = vunpack.c.l.b16 %v167
    %v204 = vunpack.c.l.b16 %v168
    %v205 = vunpack.c.l.b16 %v169
    %v206 = vunpack.c.l.b16 %v170
    %v207 = vunpack.c.l.b16 %v171
    %v208 = vpack.c.b16 %v201, %v200
    %v209 = vpack.c.b16 %v203, %v202
    %v210 = vpack.c.b16 %v205, %v204
    %v211 = vpack.c.b16 %v207, %v206
    %vm216 = vcmask 523264
    %v218 = vsel %vm216, %v188, 0
    %v221 = vsel %vm216, %v189, 0
    %v224 = vsel %vm216, %v190, 0
    %v227 = vsel %vm216, %v191, 0
    %229 = vmatprep.subr.bf16.mxu0 0
    %230 = vmatpush1.bf16.msra.mxu0 %v208
    %231 = vmatprep.subr.bf16.mxu0 0
    %232 = vmatpush1.bf16.msra.mxu0 %v209
    %233 = vmatprep.subr.bf16.mxu0 0
    %234 = vmatpush1.bf16.msra.mxu0 %v210
    %235 = vmatprep.subr.bf16.mxu0 0
    %236 = vmatpush1.bf16.msra.mxu0 %v211
    %237 = vmatprep.subr.bf16.mxu0 0
    %238 = vmatpush1.bf16.msra.mxu0 0
    %239 = vmatprep.subr.bf16.mxu0 0
    %240 = vmatpush1.bf16.msra.mxu0 0
    %241 = vmatprep.subr.bf16.mxu0 0
    %242 = vmatpush1.bf16.msra.mxu0 0
    %243 = vmatprep.subr.bf16.mxu0 0
    %244 = vmatpush1.bf16.msra.mxu0 0
    %245 = vmatprep.subr.bf16.mxu0 0
    %246 = vmatpush1.bf16.msra.mxu0 0
    %247 = vmatprep.subr.bf16.mxu0 0
    %248 = vmatpush1.bf16.msra.mxu0 0
    %249 = vmatprep.subr.bf16.mxu0 0
    %250 = vmatpush1.bf16.msra.mxu0 0
    %251 = vmatprep.subr.bf16.mxu0 0
    %252 = vmatpush1.bf16.msra.mxu0 0
    %253 = vmatprep.subr.bf16.mxu0 0
    %254 = vmatpush1.bf16.msra.mxu0 0
    %255 = vmatprep.subr.bf16.mxu0 0
    %256 = vmatpush1.bf16.msra.mxu0 0
    %257 = vmatprep.subr.bf16.mxu0 0
    %258 = vmatpush1.bf16.msra.mxu0 0
    %259 = vmatprep.subr.bf16.mxu0 0
    %260 = vmatpush1.bf16.msra.mxu0 0
    %261 = vmatprep.mubr.bf16.mxu0 0
    %262 = vmatmul.mubr.bf16.gmra.mrb[0].mxu0 %v218
    %v263 = vpop.f32.mrb[0].mxu0
    %v264 = vadd.f32 0.0, %v263
    %v265 = vpop.f32.mrb[0].mxu0
    %v266 = vpop.f32.mrb[0].mxu0
    %v267 = vadd.f32 0.0, %v266
    %v268 = vpop.f32.mrb[0].mxu0
    %269 = vmatprep.mubr.bf16.mxu0 0
    %270 = vmatmul.mubr.bf16.gmra.mrb[0].mxu0 %v221
    %v271 = vpop.f32.mrb[0].mxu0
    %v272 = vadd.f32 0.0, %v271
    %v273 = vpop.f32.mrb[0].mxu0
    %v274 = vpop.f32.mrb[0].mxu0
    %v275 = vadd.f32 0.0, %v274
    %v276 = vpop.f32.mrb[0].mxu0
    %277 = vmatprep.mubr.bf16.mxu0 0
    %278 = vmatmul.mubr.bf16.gmra.mrb[0].mxu0 %v224
    %v279 = vpop.f32.mrb[0].mxu0
    %v280 = vadd.f32 0.0, %v279
    %v281 = vpop.f32.mrb[0].mxu0
    %v282 = vpop.f32.mrb[0].mxu0
    %v283 = vadd.f32 0.0, %v282
    %v284 = vpop.f32.mrb[0].mxu0
    %285 = vmatprep.mubr.bf16.mxu0 0
    %286 = vmatmul.mubr.bf16.gmra.mrb[0].mxu0 %v227
    %v287 = vpop.f32.mrb[0].mxu0
    %v288 = vadd.f32 0.0, %v287
    %v289 = vpop.f32.mrb[0].mxu0
    %v290 = vpop.f32.mrb[0].mxu0
    %v291 = vadd.f32 0.0, %v290
    %v292 = vpop.f32.mrb[0].mxu0
    %293 = vdwg.mxu0
    %v294 = vld [vmem:[%s4] sm:$0xff]
    %v295 = vld [vmem:[%s4 + $0x8] sm:$0xff]
    %v298 = vunpack.c.l.b16 %v294
    %v299 = vunpack.c.h.b16 %v294
    %v300 = vunpack.c.l.b16 %v295
    %v301 = vunpack.c.h.b16 %v295
    %v302 = vpack.c.b16 %v300, %v298
    %v303 = vpack.c.b16 %v301, %v299
    %vm306 = vcmask 130048
    %v308 = vsel %vm306, %v208, 0
    %v311 = vsel %vm306, %v209, 0
    %v314 = vsel %vm306, %v210, 0
    %v317 = vsel %vm306, %v211, 0
    %319 = vmatprep.subr.bf16.mxu0 %v303
    %320 = vmatpush1.bf16.msra.mxu0 %v302
    %321 = vmatprep.subr.bf16.mxu0 0
    %322 = vmatpush1.bf16.msra.mxu0 0
    %323 = vmatprep.subr.bf16.mxu0 0
    %324 = vmatpush1.bf16.msra.mxu0 0
    %325 = vmatprep.subr.bf16.mxu0 0
    %326 = vmatpush1.bf16.msra.mxu0 0
    %327 = vmatprep.subr.bf16.mxu0 0
    %328 = vmatpush1.bf16.msra.mxu0 0
    %329 = vmatprep.subr.bf16.mxu0 0
    %330 = vmatpush1.bf16.msra.mxu0 0
    %331 = vmatprep.subr.bf16.mxu0 0
    %332 = vmatpush1.bf16.msra.mxu0 0
    %333 = vmatprep.subr.bf16.mxu0 0
    %334 = vmatpush1.bf16.msra.mxu0 0
    %335 = vmatprep.subr.bf16.mxu0 0
    %336 = vmatpush1.bf16.msra.mxu0 0
    %337 = vmatprep.subr.bf16.mxu0 0
    %338 = vmatpush1.bf16.msra.mxu0 0
    %339 = vmatprep.subr.bf16.mxu0 0
    %340 = vmatpush1.bf16.msra.mxu0 0
    %341 = vmatprep.subr.bf16.mxu0 0
    %342 = vmatpush1.bf16.msra.mxu0 0
    %343 = vmatprep.subr.bf16.mxu0 0
    %344 = vmatpush1.bf16.msra.mxu0 0
    %345 = vmatprep.subr.bf16.mxu0 0
    %346 = vmatpush1.bf16.msra.mxu0 0
    %347 = vmatprep.subr.bf16.mxu0 0
    %348 = vmatpush1.bf16.msra.mxu0 0
    %349 = vmatprep.subr.bf16.mxu0 0
    %350 = vmatpush1.bf16.msra.mxu0 0
    %351 = vmatprep.mubr.bf16.mxu0 0
    %352 = vmatmul.mubr.bf16.gmra.mrb[0].mxu0 %v308
    %v353 = vpop.f32.mrb[0].mxu0
    %v354 = vadd.f32 0.0, %v353
    %v355 = vpop.f32.mrb[0].mxu0
    %v356 = vadd.f32 0.0, %v355
    %v357 = vpop.f32.mrb[0].mxu0
    %v358 = vadd.f32 0.0, %v357
    %v359 = vpop.f32.mrb[0].mxu0
    %v360 = vadd.f32 0.0, %v359
    %361 = vmatprep.mubr.bf16.mxu0 0
    %362 = vmatmul.mubr.bf16.gmra.mrb[0].mxu0 %v311
    %v363 = vpop.f32.mrb[0].mxu0
    %v364 = vadd.f32 0.0, %v363
    %v365 = vpop.f32.mrb[0].mxu0
    %v366 = vadd.f32 0.0, %v365
    %v367 = vpop.f32.mrb[0].mxu0
    %v368 = vadd.f32 0.0, %v367
    %v369 = vpop.f32.mrb[0].mxu0
    %v370 = vadd.f32 0.0, %v369
    %371 = vmatprep.mubr.bf16.mxu0 0
    %372 = vmatmul.mubr.bf16.gmra.mrb[0].mxu0 %v314
    %v373 = vpop.f32.mrb[0].mxu0
    %v374 = vadd.f32 0.0, %v373
    %v375 = vpop.f32.mrb[0].mxu0
    %v376 = vadd.f32 0.0, %v375
    %v377 = vpop.f32.mrb[0].mxu0
    %v378 = vadd.f32 0.0, %v377
    %v379 = vpop.f32.mrb[0].mxu0
    %v380 = vadd.f32 0.0, %v379
    %381 = vmatprep.mubr.bf16.mxu0 0
    %382 = vmatmul.mubr.bf16.gmra.mrb[0].mxu0 %v317
    %v383 = vpop.f32.mrb[0].mxu0
    %v384 = vadd.f32 0.0, %v383
    %v385 = vpop.f32.mrb[0].mxu0
    %v386 = vadd.f32 0.0, %v385
    %v387 = vpop.f32.mrb[0].mxu0
    %v388 = vadd.f32 0.0, %v387
    %v389 = vpop.f32.mrb[0].mxu0
    %v390 = vadd.f32 0.0, %v389
    %391 = vdwg.mxu0
    %v392 = vpack.c.bf16 %v267, %v264
    %v393 = vpack.c.bf16 %v275, %v272
    %v394 = vpack.c.bf16 %v283, %v280
    %v395 = vpack.c.bf16 %v291, %v288
    %v396 = vld [vmem:[%s3] sm:$0xf]
    %v397 = vld [vmem:[%s3 + $0x4] sm:$0xf]
    %v400 = vunpack.c.l.b16 %v396
    %v401 = vunpack.c.l.b16 %v397
    %v402 = vpack.c.b16 %v401, %v400
    %v405 = vsel %vm306, %v392, 0
    %v408 = vsel %vm306, %v393, 0
    %v411 = vsel %vm306, %v394, 0
    %v414 = vsel %vm306, %v395, 0
    %416 = vmatprep.subr.bf16.mxu0 0
    %417 = vmatpush1.bf16.msra.mxu0 %v402
    %418 = vmatprep.subr.bf16.mxu0 0
    %419 = vmatpush1.bf16.msra.mxu0 0
    %420 = vmatprep.subr.bf16.mxu0 0
    %421 = vmatpush1.bf16.msra.mxu0 0
    %422 = vmatprep.subr.bf16.mxu0 0
    %423 = vmatpush1.bf16.msra.mxu0 0
    %424 = vmatprep.subr.bf16.mxu0 0
    %425 = vmatpush1.bf16.msra.mxu0 0
    %426 = vmatprep.subr.bf16.mxu0 0
    %427 = vmatpush1.bf16.msra.mxu0 0
    %428 = vmatprep.subr.bf16.mxu0 0
    %429 = vmatpush1.bf16.msra.mxu0 0
    %430 = vmatprep.subr.bf16.mxu0 0
    %431 = vmatpush1.bf16.msra.mxu0 0
    %432 = vmatprep.subr.bf16.mxu0 0
    %433 = vmatpush1.bf16.msra.mxu0 0
    %434 = vmatprep.subr.bf16.mxu0 0
    %435 = vmatpush1.bf16.msra.mxu0 0
    %436 = vmatprep.subr.bf16.mxu0 0
    %437 = vmatpush1.bf16.msra.mxu0 0
    %438 = vmatprep.subr.bf16.mxu0 0
    %439 = vmatpush1.bf16.msra.mxu0 0
    %440 = vmatprep.subr.bf16.mxu0 0
    %441 = vmatpush1.bf16.msra.mxu0 0
    %442 = vmatprep.subr.bf16.mxu0 0
    %443 = vmatpush1.bf16.msra.mxu0 0
    %444 = vmatprep.subr.bf16.mxu0 0
    %445 = vmatpush1.bf16.msra.mxu0 0
    %446 = vmatprep.subr.bf16.mxu0 0
    %447 = vmatpush1.bf16.msra.mxu0 0
    %448 = vmatprep.mubr.bf16.mxu0 0
    %449 = vmatmul.mubr.bf16.gmra.mrb[0].mxu0 %v405
    %v450 = vpop.f32.mrb[0].mxu0
    %v451 = vadd.f32 %v354, %v450
    %v452 = vpop.f32.mrb[0].mxu0
    %v453 = vpop.f32.mrb[0].mxu0
    %v454 = vadd.f32 %v358, %v453
    %v455 = vpop.f32.mrb[0].mxu0
    %456 = vmatprep.mubr.bf16.mxu0 0
    %457 = vmatmul.mubr.bf16.gmra.mrb[0].mxu0 %v408
    %v458 = vpop.f32.mrb[0].mxu0
    %v459 = vadd.f32 %v364, %v458
    %v460 = vpop.f32.mrb[0].mxu0
    %v461 = vpop.f32.mrb[0].mxu0
    %v462 = vadd.f32 %v368, %v461
    %v463 = vpop.f32.mrb[0].mxu0
    %464 = vmatprep.mubr.bf16.mxu0 0
    %465 = vmatmul.mubr.bf16.gmra.mrb[0].mxu0 %v411
    %v466 = vpop.f32.mrb[0].mxu0
    %v467 = vadd.f32 %v374, %v466
    %v468 = vpop.f32.mrb[0].mxu0
    %v469 = vpop.f32.mrb[0].mxu0
    %v470 = vadd.f32 %v378, %v469
    %v471 = vpop.f32.mrb[0].mxu0
    %472 = vmatprep.mubr.bf16.mxu0 0
    %473 = vmatmul.mubr.bf16.gmra.mrb[0].mxu0 %v414
    %v474 = vpop.f32.mrb[0].mxu0
    %v475 = vadd.f32 %v384, %v474
    %v476 = vpop.f32.mrb[0].mxu0
    %v477 = vpop.f32.mrb[0].mxu0
    %v478 = vadd.f32 %v388, %v477
    %v479 = vpop.f32.mrb[0].mxu0
    %480 = vdwg.mxu0
    %v481 = vld [vmem:[%s5] sm:$0x1]
    %v483 = vlaneseq
    %v484 = vshrl.u32 %v483, 7
    %v485 = vsub.s32 0, %v484
    %v486 = vrot.slane %v481, %v485
    %v488 = vmul.f32 %v451, %v486
    %v489 = vmul.f32 %v454, %v486
    %v490 = vmul.f32 %v459, %v486
    %v491 = vmul.f32 %v462, %v486
    %v492 = vmul.f32 %v467, %v486
    %v493 = vmul.f32 %v470, %v486
    %v494 = vmul.f32 %v475, %v486
    %v495 = vmul.f32 %v478, %v486
    %v496 = vld [vmem:[%s6] sm:$0x1]
    %v498 = vlaneseq
    %v499 = vshrl.u32 %v498, 7
    %v500 = vsub.s32 0, %v499
    %v501 = vrot.slane %v496, %v500
    %v503 = vadd.f32 %v488, %v501
    %v504 = vadd.f32 %v489, %v501
    %v505 = vadd.f32 %v490, %v501
    %v506 = vadd.f32 %v491, %v501
    %v507 = vadd.f32 %v492, %v501
    %v508 = vadd.f32 %v493, %v501
    %v509 = vadd.f32 %v494, %v501
    %v510 = vadd.f32 %v495, %v501
    %v511 = vmax.f32 %v503, 0.0
    %v512 = vmax.f32 %v504, 0.0
    %v513 = vmax.f32 %v505, 0.0
    %v514 = vmax.f32 %v506, 0.0
    %v515 = vmax.f32 %v507, 0.0
    %v516 = vmax.f32 %v508, 0.0
    %v517 = vmax.f32 %v509, 0.0
    %v518 = vmax.f32 %v510, 0.0
    %v519 = vadd.f32 %v511, %v356
    %v520 = vadd.f32 %v512, %v360
    %v521 = vadd.f32 %v513, %v366
    %v522 = vadd.f32 %v514, %v370
    %v523 = vadd.f32 %v515, %v376
    %v524 = vadd.f32 %v516, %v380
    %v525 = vadd.f32 %v517, %v386
    %v526 = vadd.f32 %v518, %v390
    %v527 = vld [vmem:[%s7] sm:$0x1]
    %v529 = vlaneseq
    %v530 = vshrl.u32 %v529, 7
    %v531 = vsub.s32 0, %v530
    %v532 = vrot.slane %v527, %v531
    %v534 = vadd.f32 %v519, %v532
    %v535 = vadd.f32 %v520, %v532
    %v536 = vadd.f32 %v521, %v532
    %v537 = vadd.f32 %v522, %v532
    %v538 = vadd.f32 %v523, %v532
    %v539 = vadd.f32 %v524, %v532
    %v540 = vadd.f32 %v525, %v532
    %v541 = vadd.f32 %v526, %v532
    %v542 = vpack.c.bf16 %v535, %v534
    %v543 = vpack.c.bf16 %v537, %v536
    %v544 = vpack.c.bf16 %v539, %v538
    %v545 = vpack.c.bf16 %v541, %v540
    %v546 = vld [vmem:[#allocation3] sm:$0xff]
    %v547 = vld [vmem:[#allocation3 + $0x8] sm:$0xf]
    %v548 = vld [vmem:[#allocation3 + $0xc] sm:$0xff]
    %v549 = vld [vmem:[#allocation3 + $0x14] sm:$0xf]
    %v550 = vld [vmem:[#allocation3 + $0x18] sm:$0xff]
    %v551 = vld [vmem:[#allocation3 + $0x20] sm:$0xf]
    %v552 = vld [vmem:[#allocation3 + $0x24] sm:$0xff]
    %v553 = vld [vmem:[#allocation3 + $0x2c] sm:$0xf]
    %v554 = vld [vmem:[#allocation3 + $0x30] sm:$0xff]
    %v555 = vld [vmem:[#allocation3 + $0x38] sm:$0xf]
    %v556 = vld [vmem:[#allocation3 + $0x3c] sm:$0xff]
    %v557 = vld [vmem:[#allocation3 + $0x44] sm:$0xf]
    %v558 = vld [vmem:[#allocation3 + $0x48] sm:$0xff]
    %v559 = vld [vmem:[#allocation3 + $0x50] sm:$0xf]
    %v560 = vld [vmem:[#allocation3 + $0x54] sm:$0xff]
    %v561 = vld [vmem:[#allocation3 + $0x5c] sm:$0xf]
    %v562 = vld [vmem:[#allocation3 + $0x60] sm:$0xff]
    %v563 = vld [vmem:[#allocation3 + $0x68] sm:$0xf]
    %v564 = vld [vmem:[#allocation3 + $0x6c] sm:$0xff]
    %v565 = vld [vmem:[#allocation3 + $0x74] sm:$0xf]
    %v566 = vld [vmem:[#allocation3 + $0x78] sm:$0xff]
    %v567 = vld [vmem:[#allocation3 + $0x80] sm:$0xf]
    %v568 = vld [vmem:[#allocation3 + $0x84] sm:$0xff]
    %v569 = vld [vmem:[#allocation3 + $0x8c] sm:$0xf]
    %v570 = vld [vmem:[#allocation3 + $0x90] sm:$0xff]
    %v571 = vld [vmem:[#allocation3 + $0x98] sm:$0xf]
    %v572 = vld [vmem:[#allocation3 + $0x9c] sm:$0xff]
    %v573 = vld [vmem:[#allocation3 + $0xa4] sm:$0xf]
    %v574 = vld [vmem:[#allocation3 + $0xa8] sm:$0xff]
    %v575 = vld [vmem:[#allocation3 + $0xb0] sm:$0xf]
    %v576 = vld [vmem:[#allocation3 + $0xb4] sm:$0xff]
    %v577 = vld [vmem:[#allocation3 + $0xbc] sm:$0xf]
    %v610 = vunpack.c.l.b16 %v546
    %v611 = vunpack.c.h.b16 %v546
    %v612 = vunpack.c.l.b16 %v547
    %v613 = vunpack.c.l.b16 %v548
    %v614 = vunpack.c.h.b16 %v548
    %v615 = vunpack.c.l.b16 %v549
    %v616 = vunpack.c.l.b16 %v550
    %v617 = vunpack.c.h.b16 %v550
    %v618 = vunpack.c.l.b16 %v551
    %v619 = vunpack.c.l.b16 %v552
    %v620 = vunpack.c.h.b16 %v552
    %v621 = vunpack.c.l.b16 %v553
    %v622 = vunpack.c.l.b16 %v554
    %v623 = vunpack.c.h.b16 %v554
    %v624 = vunpack.c.l.b16 %v555
    %v625 = vunpack.c.l.b16 %v556
    %v626 = vunpack.c.h.b16 %v556
    %v627 = vunpack.c.l.b16 %v557
    %v628 = vunpack.c.l.b16 %v558
    %v629 = vunpack.c.h.b16 %v558
    %v630 = vunpack.c.l.b16 %v559
    %v631 = vunpack.c.l.b16 %v560
    %v632 = vunpack.c.h.b16 %v560
    %v633 = vunpack.c.l.b16 %v561
    %v634 = vunpack.c.l.b16 %v562
    %v635 = vunpack.c.h.b16 %v562
    %v636 = vunpack.c.l.b16 %v563
    %v637 = vunpack.c.l.b16 %v564
    %v638 = vunpack.c.h.b16 %v564
    %v639 = vunpack.c.l.b16 %v565
    %v640 = vunpack.c.l.b16 %v566
    %v641 = vunpack.c.h.b16 %v566
    %v642 = vunpack.c.l.b16 %v567
    %v643 = vunpack.c.l.b16 %v568
    %v644 = vunpack.c.h.b16 %v568
    %v645 = vunpack.c.l.b16 %v569
    %v646 = vunpack.c.l.b16 %v570
    %v647 = vunpack.c.h.b16 %v570
    %v648 = vunpack.c.l.b16 %v571
    %v649 = vunpack.c.l.b16 %v572
    %v650 = vunpack.c.h.b16 %v572
    %v651 = vunpack.c.l.b16 %v573
    %v652 = vunpack.c.l.b16 %v574
    %v653 = vunpack.c.h.b16 %v574
    %v654 = vunpack.c.l.b16 %v575
    %v655 = vunpack.c.l.b16 %v576
    %v656 = vunpack.c.h.b16 %v576
    %v657 = vunpack.c.l.b16 %v577
    %v658 = vpack.c.b16 %v613, %v610
    %v659 = vpack.c.b16 %v614, %v611
    %v660 = vpack.c.b16 %v615, %v612
    %v661 = vpack.c.b16 %v619, %v616
    %v662 = vpack.c.b16 %v620, %v617
    %v663 = vpack.c.b16 %v621, %v618
    %v664 = vpack.c.b16 %v625, %v622
    %v665 = vpack.c.b16 %v626, %v623
    %v666 = vpack.c.b16 %v627, %v624
    %v667 = vpack.c.b16 %v631, %v628
    %v668 = vpack.c.b16 %v632, %v629
    %v669 = vpack.c.b16 %v633, %v630
    %v670 = vpack.c.b16 %v637, %v634
    %v671 = vpack.c.b16 %v638, %v635
    %v672 = vpack.c.b16 %v639, %v636
    %v673 = vpack.c.b16 %v643, %v640
    %v674 = vpack.c.b16 %v644, %v641
    %v675 = vpack.c.b16 %v645, %v642
    %v676 = vpack.c.b16 %v649, %v646
    %v677 = vpack.c.b16 %v650, %v647
    %v678 = vpack.c.b16 %v651, %v648
    %v679 = vpack.c.b16 %v655, %v652
    %v680 = vpack.c.b16 %v656, %v653
    %v681 = vpack.c.b16 %v657, %v654
    %706 = vmatprep.subr.bf16.mxu0 %v659
    %707 = vmatpush1.bf16.msra.mxu0 %v658
    %708 = vmatprep.subr.bf16.mxu0 %v662
    %709 = vmatpush1.bf16.msra.mxu0 %v661
    %710 = vmatprep.subr.bf16.mxu0 %v665
    %711 = vmatpush1.bf16.msra.mxu0 %v664
    %712 = vmatprep.subr.bf16.mxu0 %v668
    %713 = vmatpush1.bf16.msra.mxu0 %v667
    %714 = vmatprep.subr.bf16.mxu0 %v671
    %715 = vmatpush1.bf16.msra.mxu0 %v670
    %716 = vmatprep.subr.bf16.mxu0 %v674
    %717 = vmatpush1.bf16.msra.mxu0 %v673
    %718 = vmatprep.subr.bf16.mxu0 %v677
    %719 = vmatpush1.bf16.msra.mxu0 %v676
    %720 = vmatprep.subr.bf16.mxu0 %v680
    %721 = vmatpush1.bf16.msra.mxu0 %v679
    %722 = vmatprep.subr.bf16.mxu0 0
    %723 = vmatpush1.bf16.msra.mxu0 0
    %724 = vmatprep.subr.bf16.mxu0 0
    %725 = vmatpush1.bf16.msra.mxu0 0
    %726 = vmatprep.subr.bf16.mxu0 0
    %727 = vmatpush1.bf16.msra.mxu0 0
    %728 = vmatprep.subr.bf16.mxu0 0
    %729 = vmatpush1.bf16.msra.mxu0 0
    %730 = vmatprep.subr.bf16.mxu0 0
    %731 = vmatpush1.bf16.msra.mxu0 0
    %732 = vmatprep.subr.bf16.mxu0 0
    %733 = vmatpush1.bf16.msra.mxu0 0
    %734 = vmatprep.subr.bf16.mxu0 0
    %735 = vmatpush1.bf16.msra.mxu0 0
    %736 = vmatprep.subr.bf16.mxu0 0
    %737 = vmatpush1.bf16.msra.mxu0 0
    %738 = vmatprep.mubr.bf16.mxu0 0
    %739 = vmatmul.mubr.bf16.gmra.mrb[0].mxu0 %v542
    %v740 = vpop.f32.mrb[0].mxu0
    %v741 = vadd.f32 0.0, %v740
    %v742 = vpop.f32.mrb[0].mxu0
    %v743 = vadd.f32 0.0, %v742
    %v744 = vpop.f32.mrb[0].mxu0
    %v745 = vadd.f32 0.0, %v744
    %v746 = vpop.f32.mrb[0].mxu0
    %v747 = vadd.f32 0.0, %v746
    %748 = vmatprep.mubr.bf16.mxu0 0
    %749 = vmatmul.mubr.bf16.gmra.mrb[0].mxu0 %v543
    %v750 = vpop.f32.mrb[0].mxu0
    %v751 = vadd.f32 0.0, %v750
    %v752 = vpop.f32.mrb[0].mxu0
    %v753 = vadd.f32 0.0, %v752
    %v754 = vpop.f32.mrb[0].mxu0
    %v755 = vadd.f32 0.0, %v754
    %v756 = vpop.f32.mrb[0].mxu0
    %v757 = vadd.f32 0.0, %v756
    %758 = vmatprep.mubr.bf16.mxu0 0
    %759 = vmatmul.mubr.bf16.gmra.mrb[0].mxu0 %v544
    %v760 = vpop.f32.mrb[0].mxu0
    %v761 = vadd.f32 0.0, %v760
    %v762 = vpop.f32.mrb[0].mxu0
    %v763 = vadd.f32 0.0, %v762
    %v764 = vpop.f32.mrb[0].mxu0
    %v765 = vadd.f32 0.0, %v764
    %v766 = vpop.f32.mrb[0].mxu0
    %v767 = vadd.f32 0.0, %v766
    %768 = vmatprep.mubr.bf16.mxu0 0
    %769 = vmatmul.mubr.bf16.gmra.mrb[0].mxu0 %v545
    %v770 = vpop.f32.mrb[0].mxu0
    %v771 = vadd.f32 0.0, %v770
    %v772 = vpop.f32.mrb[0].mxu0
    %v773 = vadd.f32 0.0, %v772
    %v774 = vpop.f32.mrb[0].mxu0
    %v775 = vadd.f32 0.0, %v774
    %v776 = vpop.f32.mrb[0].mxu0
    %v777 = vadd.f32 0.0, %v776
    %778 = vdwg.mxu0
    %779 = vmatprep.subr.bf16.mxu0 0
    %780 = vmatpush1.bf16.msra.mxu0 %v660
    %781 = vmatprep.subr.bf16.mxu0 0
    %782 = vmatpush1.bf16.msra.mxu0 %v663
    %783 = vmatprep.subr.bf16.mxu0 0
    %784 = vmatpush1.bf16.msra.mxu0 %v666
    %785 = vmatprep.subr.bf16.mxu0 0
    %786 = vmatpush1.bf16.msra.mxu0 %v669
    %787 = vmatprep.subr.bf16.mxu0 0
    %788 = vmatpush1.bf16.msra.mxu0 %v672
    %789 = vmatprep.subr.bf16.mxu0 0
    %790 = vmatpush1.bf16.msra.mxu0 %v675
    %791 = vmatprep.subr.bf16.mxu0 0
    %792 = vmatpush1.bf16.msra.mxu0 %v678
    %793 = vmatprep.subr.bf16.mxu0 0
    %794 = vmatpush1.bf16.msra.mxu0 %v681
    %795 = vmatprep.subr.bf16.mxu0 0
    %796 = vmatpush1.bf16.msra.mxu0 0
    %797 = vmatprep.subr.bf16.mxu0 0
    %798 = vmatpush1.bf16.msra.mxu0 0
    %799 = vmatprep.subr.bf16.mxu0 0
    %800 = vmatpush1.bf16.msra.mxu0 0
    %801 = vmatprep.subr.bf16.mxu0 0
    %802 = vmatpush1.bf16.msra.mxu0 0
    %803 = vmatprep.subr.bf16.mxu0 0
    %804 = vmatpush1.bf16.msra.mxu0 0
    %805 = vmatprep.subr.bf16.mxu0 0
    %806 = vmatpush1.bf16.msra.mxu0 0
    %807 = vmatprep.subr.bf16.mxu0 0
    %808 = vmatpush1.bf16.msra.mxu0 0
    %809 = vmatprep.subr.bf16.mxu0 0
    %810 = vmatpush1.bf16.msra.mxu0 0
    %811 = vmatprep.mubr.bf16.mxu0 0
    %812 = vmatmul.mubr.bf16.gmra.mrb[0].mxu0 %v542
    %v813 = vpop.f32.mrb[0].mxu0
    %v814 = vadd.f32 0.0, %v813
    %v815 = vpop.f32.mrb[0].mxu0
    %v816 = vpop.f32.mrb[0].mxu0
    %v817 = vadd.f32 0.0, %v816
    %v818 = vpop.f32.mrb[0].mxu0
    %819 = vmatprep.mubr.bf16.mxu0 0
    %820 = vmatmul.mubr.bf16.gmra.mrb[0].mxu0 %v543
    %v821 = vpop.f32.mrb[0].mxu0
    %v822 = vadd.f32 0.0, %v821
    %v823 = vpop.f32.mrb[0].mxu0
    %v824 = vpop.f32.mrb[0].mxu0
    %v825 = vadd.f32 0.0, %v824
    %v826 = vpop.f32.mrb[0].mxu0
    %827 = vmatprep.mubr.bf16.mxu0 0
    %828 = vmatmul.mubr.bf16.gmra.mrb[0].mxu0 %v544
    %v829 = vpop.f32.mrb[0].mxu0
    %v830 = vadd.f32 0.0, %v829
    %v831 = vpop.f32.mrb[0].mxu0
    %v832 = vpop.f32.mrb[0].mxu0
    %v833 = vadd.f32 0.0, %v832
    %v834 = vpop.f32.mrb[0].mxu0
    %835 = vmatprep.mubr.bf16.mxu0 0
    %836 = vmatmul.mubr.bf16.gmra.mrb[0].mxu0 %v545
    %v837 = vpop.f32.mrb[0].mxu0
    %v838 = vadd.f32 0.0, %v837
    %v839 = vpop.f32.mrb[0].mxu0
    %v840 = vpop.f32.mrb[0].mxu0
    %v841 = vadd.f32 0.0, %v840
    %v842 = vpop.f32.mrb[0].mxu0
    %843 = vdwg.mxu0
    %v844 = vpack.c.bf16 %v745, %v741
    %v845 = vpack.c.bf16 %v755, %v751
    %v846 = vpack.c.bf16 %v765, %v761
    %v847 = vpack.c.bf16 %v775, %v771
    %848 = vmatprep.subr.bf16.mxu0 0
    %849 = vmatpush1.bf16.msra.mxu0 %v844
    %850 = vmatprep.subr.bf16.mxu0 0
    %851 = vmatpush1.bf16.msra.mxu0 %v845
    %852 = vmatprep.subr.bf16.mxu0 0
    %853 = vmatpush1.bf16.msra.mxu0 %v846
    %854 = vmatprep.subr.bf16.mxu0 0
    %855 = vmatpush1.bf16.msra.mxu0 %v847
    %856 = vmatprep.subr.bf16.mxu0 0
    %857 = vmatpush1.bf16.msra.mxu0 0
    %858 = vmatprep.subr.bf16.mxu0 0
    %859 = vmatpush1.bf16.msra.mxu0 0
    %860 = vmatprep.subr.bf16.mxu0 0
    %861 = vmatpush1.bf16.msra.mxu0 0
    %862 = vmatprep.subr.bf16.mxu0 0
    %863 = vmatpush1.bf16.msra.mxu0 0
    %864 = vmatprep.subr.bf16.mxu0 0
    %865 = vmatpush1.bf16.msra.mxu0 0
    %866 = vmatprep.subr.bf16.mxu0 0
    %867 = vmatpush1.bf16.msra.mxu0 0
    %868 = vmatprep.subr.bf16.mxu0 0
    %869 = vmatpush1.bf16.msra.mxu0 0
    %870 = vmatprep.subr.bf16.mxu0 0
    %871 = vmatpush1.bf16.msra.mxu0 0
    %872 = vmatprep.subr.bf16.mxu0 0
    %873 = vmatpush1.bf16.msra.mxu0 0
    %874 = vmatprep.subr.bf16.mxu0 0
    %875 = vmatpush1.bf16.msra.mxu0 0
    %876 = vmatprep.subr.bf16.mxu0 0
    %877 = vmatpush1.bf16.msra.mxu0 0
    %878 = vmatprep.subr.bf16.mxu0 0
    %879 = vmatpush1.bf16.msra.mxu0 0
    %880 = vmatprep.mubr.bf16.mxu0 0
    %881 = vmatmul.mubr.bf16.gmra.mrb[0].mxu0 %v218
    %v882 = vpop.f32.mrb[0].mxu0
    %v883 = vadd.f32 %v743, %v882
    %v884 = vpop.f32.mrb[0].mxu0
    %v885 = vpop.f32.mrb[0].mxu0
    %v886 = vadd.f32 %v747, %v885
    %v887 = vpop.f32.mrb[0].mxu0
    %888 = vmatprep.mubr.bf16.mxu0 0
    %889 = vmatmul.mubr.bf16.gmra.mrb[0].mxu0 %v221
    %v890 = vpop.f32.mrb[0].mxu0
    %v891 = vadd.f32 %v753, %v890
    %v892 = vpop.f32.mrb[0].mxu0
    %v893 = vpop.f32.mrb[0].mxu0
    %v894 = vadd.f32 %v757, %v893
    %v895 = vpop.f32.mrb[0].mxu0
    %896 = vmatprep.mubr.bf16.mxu0 0
    %897 = vmatmul.mubr.bf16.gmra.mrb[0].mxu0 %v224
    %v898 = vpop.f32.mrb[0].mxu0
    %v899 = vadd.f32 %v763, %v898
    %v900 = vpop.f32.mrb[0].mxu0
    %v901 = vpop.f32.mrb[0].mxu0
    %v902 = vadd.f32 %v767, %v901
    %v903 = vpop.f32.mrb[0].mxu0
    %904 = vmatprep.mubr.bf16.mxu0 0
    %905 = vmatmul.mubr.bf16.gmra.mrb[0].mxu0 %v227
    %v906 = vpop.f32.mrb[0].mxu0
    %v907 = vadd.f32 %v773, %v906
    %v908 = vpop.f32.mrb[0].mxu0
    %v909 = vpop.f32.mrb[0].mxu0
    %v910 = vadd.f32 %v777, %v909
    %v911 = vpop.f32.mrb[0].mxu0
    %912 = vdwg.mxu0
    %v913 = vld [vmem:[%s9] sm:$0x1]
    %v915 = vlaneseq
    %v916 = vshrl.u32 %v915, 7
    %v917 = vsub.s32 0, %v916
    %v918 = vrot.slane %v913, %v917
    %v920 = vmul.f32 %v883, %v918
    %v921 = vmul.f32 %v886, %v918
    %v922 = vmul.f32 %v891, %v918
    %v923 = vmul.f32 %v894, %v918
    %v924 = vmul.f32 %v899, %v918
    %v925 = vmul.f32 %v902, %v918
    %v926 = vmul.f32 %v907, %v918
    %v927 = vmul.f32 %v910, %v918
    %v928 = vld [vmem:[%s10] sm:$0x1]
    %v930 = vlaneseq
    %v931 = vshrl.u32 %v930, 7
    %v932 = vsub.s32 0, %v931
    %v933 = vrot.slane %v928, %v932
    %v935 = vadd.f32 %v920, %v933
    %v936 = vadd.f32 %v921, %v933
    %v937 = vadd.f32 %v922, %v933
    %v938 = vadd.f32 %v923, %v933
    %v939 = vadd.f32 %v924, %v933
    %v940 = vadd.f32 %v925, %v933
    %v941 = vadd.f32 %v926, %v933
    %v942 = vadd.f32 %v927, %v933
    %v943 = vmax.f32 %v935, 0.0
    %v944 = vmax.f32 %v936, 0.0
    %v945 = vmax.f32 %v937, 0.0
    %v946 = vmax.f32 %v938, 0.0
    %v947 = vmax.f32 %v939, 0.0
    %v948 = vmax.f32 %v940, 0.0
    %v949 = vmax.f32 %v941, 0.0
    %v950 = vmax.f32 %v942, 0.0
    %v951 = vadd.f32 %v943, %v814
    %v952 = vadd.f32 %v944, %v817
    %v953 = vadd.f32 %v945, %v822
    %v954 = vadd.f32 %v946, %v825
    %v955 = vadd.f32 %v947, %v830
    %v956 = vadd.f32 %v948, %v833
    %v957 = vadd.f32 %v949, %v838
    %v958 = vadd.f32 %v950, %v841
    %v959 = vld [vmem:[%s11] sm:$0x1]
    %v961 = vlaneseq
    %v962 = vshrl.u32 %v961, 7
    %v963 = vsub.s32 0, %v962
    %v964 = vrot.slane %v959, %v963
    %v966 = vadd.f32 %v951, %v964
    %v967 = vadd.f32 %v952, %v964
    %v968 = vadd.f32 %v953, %v964
    %v969 = vadd.f32 %v954, %v964
    %v970 = vadd.f32 %v955, %v964
    %v971 = vadd.f32 %v956, %v964
    %v972 = vadd.f32 %v957, %v964
    %v973 = vadd.f32 %v958, %v964
    %v974 = vpack.c.bf16 %v967, %v966
    %v975 = vpack.c.bf16 %v969, %v968
    %v976 = vpack.c.bf16 %v971, %v970
    %v977 = vpack.c.bf16 %v973, %v972
    %v978 = vld [vmem:[#allocation5] sm:$0xff]
    %v979 = vld [vmem:[#allocation5 + $0x8] sm:$0xf]
    %v980 = vld [vmem:[#allocation5 + $0xc] sm:$0xff]
    %v981 = vld [vmem:[#allocation5 + $0x14] sm:$0xf]
    %v982 = vld [vmem:[#allocation5 + $0x18] sm:$0xff]
    %v983 = vld [vmem:[#allocation5 + $0x20] sm:$0xf]
    %v984 = vld [vmem:[#allocation5 + $0x24] sm:$0xff]
    %v985 = vld [vmem:[#allocation5 + $0x2c] sm:$0xf]
    %v986 = vld [vmem:[#allocation5 + $0x30] sm:$0xff]
    %v987 = vld [vmem:[#allocation5 + $0x38] sm:$0xf]
    %v988 = vld [vmem:[#allocation5 + $0x3c] sm:$0xff]
    %v989 = vld [vmem:[#allocation5 + $0x44] sm:$0xf]
    %v990 = vld [vmem:[#allocation5 + $0x48] sm:$0xff]
    %v991 = vld [vmem:[#allocation5 + $0x50] sm:$0xf]
    %v992 = vld [vmem:[#allocation5 + $0x54] sm:$0xff]
    %v993 = vld [vmem:[#allocation5 + $0x5c] sm:$0xf]
    %v994 = vld [vmem:[#allocation5 + $0x60] sm:$0xff]
    %v995 = vld [vmem:[#allocation5 + $0x68] sm:$0xf]
    %v996 = vld [vmem:[#allocation5 + $0x6c] sm:$0xff]
    %v997 = vld [vmem:[#allocation5 + $0x74] sm:$0xf]
    %v998 = vld [vmem:[#allocation5 + $0x78] sm:$0xff]
    %v999 = vld [vmem:[#allocation5 + $0x80] sm:$0xf]
    %v1000 = vld [vmem:[#allocation5 + $0x84] sm:$0xff]
    %v1001 = vld [vmem:[#allocation5 + $0x8c] sm:$0xf]
    %v1002 = vld [vmem:[#allocation5 + $0x90] sm:$0xff]
    %v1003 = vld [vmem:[#allocation5 + $0x98] sm:$0xf]
    %v1004 = vld [vmem:[#allocation5 + $0x9c] sm:$0xff]
    %v1005 = vld [vmem:[#allocation5 + $0xa4] sm:$0xf]
    %v1006 = vld [vmem:[#allocation5 + $0xa8] sm:$0xff]
    %v1007 = vld [vmem:[#allocation5 + $0xb0] sm:$0xf]
    %v1008 = vld [vmem:[#allocation5 + $0xb4] sm:$0xff]
    %v1009 = vld [vmem:[#allocation5 + $0xbc] sm:$0xf]
    %v1042 = vunpack.c.l.b16 %v978
    %v1043 = vunpack.c.h.b16 %v978
    %v1044 = vunpack.c.l.b16 %v979
    %v1045 = vunpack.c.l.b16 %v980
    %v1046 = vunpack.c.h.b16 %v980
    %v1047 = vunpack.c.l.b16 %v981
    %v1048 = vunpack.c.l.b16 %v982
    %v1049 = vunpack.c.h.b16 %v982
    %v1050 = vunpack.c.l.b16 %v983
    %v1051 = vunpack.c.l.b16 %v984
    %v1052 = vunpack.c.h.b16 %v984
    %v1053 = vunpack.c.l.b16 %v985
    %v1054 = vunpack.c.l.b16 %v986
    %v1055 = vunpack.c.h.b16 %v986
    %v1056 = vunpack.c.l.b16 %v987
    %v1057 = vunpack.c.l.b16 %v988
    %v1058 = vunpack.c.h.b16 %v988
    %v1059 = vunpack.c.l.b16 %v989
    %v1060 = vunpack.c.l.b16 %v990
    %v1061 = vunpack.c.h.b16 %v990
    %v1062 = vunpack.c.l.b16 %v991
    %v1063 = vunpack.c.l.b16 %v992
    %v1064 = vunpack.c.h.b16 %v992
    %v1065 = vunpack.c.l.b16 %v993
    %v1066 = vunpack.c.l.b16 %v994
    %v1067 = vunpack.c.h.b16 %v994
    %v1068 = vunpack.c.l.b16 %v995
    %v1069 = vunpack.c.l.b16 %v996
    %v1070 = vunpack.c.h.b16 %v996
    %v1071 = vunpack.c.l.b16 %v997
    %v1072 = vunpack.c.l.b16 %v998
    %v1073 = vunpack.c.h.b16 %v998
    %v1074 = vunpack.c.l.b16 %v999
    %v1075 = vunpack.c.l.b16 %v1000
    %v1076 = vunpack.c.h.b16 %v1000
    %v1077 = vunpack.c.l.b16 %v1001
    %v1078 = vunpack.c.l.b16 %v1002
    %v1079 = vunpack.c.h.b16 %v1002
    %v1080 = vunpack.c.l.b16 %v1003
    %v1081 = vunpack.c.l.b16 %v1004
    %v1082 = vunpack.c.h.b16 %v1004
    %v1083 = vunpack.c.l.b16 %v1005
    %v1084 = vunpack.c.l.b16 %v1006
    %v1085 = vunpack.c.h.b16 %v1006
    %v1086 = vunpack.c.l.b16 %v1007
    %v1087 = vunpack.c.l.b16 %v1008
    %v1088 = vunpack.c.h.b16 %v1008
    %v1089 = vunpack.c.l.b16 %v1009
    %v1090 = vpack.c.b16 %v1045, %v1042
    %v1091 = vpack.c.b16 %v1046, %v1043
    %v1092 = vpack.c.b16 %v1047, %v1044
    %v1093 = vpack.c.b16 %v1051, %v1048
    %v1094 = vpack.c.b16 %v1052, %v1049
    %v1095 = vpack.c.b16 %v1053, %v1050
    %v1096 = vpack.c.b16 %v1057, %v1054
    %v1097 = vpack.c.b16 %v1058, %v1055
    %v1098 = vpack.c.b16 %v1059, %v1056
    %v1099 = vpack.c.b16 %v1063, %v1060
    %v1100 = vpack.c.b16 %v1064, %v1061
    %v1101 = vpack.c.b16 %v1065, %v1062
    %v1102 = vpack.c.b16 %v1069, %v1066
    %v1103 = vpack.c.b16 %v1070, %v1067
    %v1104 = vpack.c.b16 %v1071, %v1068
    %v1105 = vpack.c.b16 %v1075, %v1072
    %v1106 = vpack.c.b16 %v1076, %v1073
    %v1107 = vpack.c.b16 %v1077, %v1074
    %v1108 = vpack.c.b16 %v1081, %v1078
    %v1109 = vpack.c.b16 %v1082, %v1079
    %v1110 = vpack.c.b16 %v1083, %v1080
    %v1111 = vpack.c.b16 %v1087, %v1084
    %v1112 = vpack.c.b16 %v1088, %v1085
    %v1113 = vpack.c.b16 %v1089, %v1086
    %1138 = vmatprep.subr.bf16.mxu0 %v1091
    %1139 = vmatpush1.bf16.msra.mxu0 %v1090
    %1140 = vmatprep.subr.bf16.mxu0 %v1094
    %1141 = vmatpush1.bf16.msra.mxu0 %v1093
    %1142 = vmatprep.subr.bf16.mxu0 %v1097
    %1143 = vmatpush1.bf16.msra.mxu0 %v1096
    %1144 = vmatprep.subr.bf16.mxu0 %v1100
    %1145 = vmatpush1.bf16.msra.mxu0 %v1099
    %1146 = vmatprep.subr.bf16.mxu0 %v1103
    %1147 = vmatpush1.bf16.msra.mxu0 %v1102
    %1148 = vmatprep.subr.bf16.mxu0 %v1106
    %1149 = vmatpush1.bf16.msra.mxu0 %v1105
    %1150 = vmatprep.subr.bf16.mxu0 %v1109
    %1151 = vmatpush1.bf16.msra.mxu0 %v1108
    %1152 = vmatprep.subr.bf16.mxu0 %v1112
    %1153 = vmatpush1.bf16.msra.mxu0 %v1111
    %1154 = vmatprep.subr.bf16.mxu0 0
    %1155 = vmatpush1.bf16.msra.mxu0 0
    %1156 = vmatprep.subr.bf16.mxu0 0
    %1157 = vmatpush1.bf16.msra.mxu0 0
    %1158 = vmatprep.subr.bf16.mxu0 0
    %1159 = vmatpush1.bf16.msra.mxu0 0
    %1160 = vmatprep.subr.bf16.mxu0 0
    %1161 = vmatpush1.bf16.msra.mxu0 0
    %1162 = vmatprep.subr.bf16.mxu0 0
    %1163 = vmatpush1.bf16.msra.mxu0 0
    %1164 = vmatprep.subr.bf16.mxu0 0
    %1165 = vmatpush1.bf16.msra.mxu0 0
    %1166 = vmatprep.subr.bf16.mxu0 0
    %1167 = vmatpush1.bf16.msra.mxu0 0
    %1168 = vmatprep.subr.bf16.mxu0 0
    %1169 = vmatpush1.bf16.msra.mxu0 0
    %1170 = vmatprep.mubr.bf16.mxu0 0
    %1171 = vmatmul.mubr.bf16.gmra.mrb[0].mxu0 %v974
    %v1172 = vpop.f32.mrb[0].mxu0
    %v1173 = vadd.f32 0.0, %v1172
    %v1174 = vpop.f32.mrb[0].mxu0
    %v1175 = vadd.f32 0.0, %v1174
    %v1176 = vpop.f32.mrb[0].mxu0
    %v1177 = vadd.f32 0.0, %v1176
    %v1178 = vpop.f32.mrb[0].mxu0
    %v1179 = vadd.f32 0.0, %v1178
    %1180 = vmatprep.mubr.bf16.mxu0 0
    %1181 = vmatmul.mubr.bf16.gmra.mrb[0].mxu0 %v975
    %v1182 = vpop.f32.mrb[0].mxu0
    %v1183 = vadd.f32 0.0, %v1182
    %v1184 = vpop.f32.mrb[0].mxu0
    %v1185 = vadd.f32 0.0, %v1184
    %v1186 = vpop.f32.mrb[0].mxu0
    %v1187 = vadd.f32 0.0, %v1186
    %v1188 = vpop.f32.mrb[0].mxu0
    %v1189 = vadd.f32 0.0, %v1188
    %1190 = vmatprep.mubr.bf16.mxu0 0
    %1191 = vmatmul.mubr.bf16.gmra.mrb[0].mxu0 %v976
    %v1192 = vpop.f32.mrb[0].mxu0
    %v1193 = vadd.f32 0.0, %v1192
    %v1194 = vpop.f32.mrb[0].mxu0
    %v1195 = vadd.f32 0.0, %v1194
    %v1196 = vpop.f32.mrb[0].mxu0
    %v1197 = vadd.f32 0.0, %v1196
    %v1198 = vpop.f32.mrb[0].mxu0
    %v1199 = vadd.f32 0.0, %v1198
    %1200 = vmatprep.mubr.bf16.mxu0 0
    %1201 = vmatmul.mubr.bf16.gmra.mrb[0].mxu0 %v977
    %v1202 = vpop.f32.mrb[0].mxu0
    %v1203 = vadd.f32 0.0, %v1202
    %v1204 = vpop.f32.mrb[0].mxu0
    %v1205 = vadd.f32 0.0, %v1204
    %v1206 = vpop.f32.mrb[0].mxu0
    %v1207 = vadd.f32 0.0, %v1206
    %v1208 = vpop.f32.mrb[0].mxu0
    %v1209 = vadd.f32 0.0, %v1208
    %1210 = vdwg.mxu0
    %1211 = vmatprep.subr.bf16.mxu0 0
    %1212 = vmatpush1.bf16.msra.mxu0 %v1092
    %1213 = vmatprep.subr.bf16.mxu0 0
    %1214 = vmatpush1.bf16.msra.mxu0 %v1095
    %1215 = vmatprep.subr.bf16.mxu0 0
    %1216 = vmatpush1.bf16.msra.mxu0 %v1098
    %1217 = vmatprep.subr.bf16.mxu0 0
    %1218 = vmatpush1.bf16.msra.mxu0 %v1101
    %1219 = vmatprep.subr.bf16.mxu0 0
    %1220 = vmatpush1.bf16.msra.mxu0 %v1104
    %1221 = vmatprep.subr.bf16.mxu0 0
    %1222 = vmatpush1.bf16.msra.mxu0 %v1107
    %1223 = vmatprep.subr.bf16.mxu0 0
    %1224 = vmatpush1.bf16.msra.mxu0 %v1110
    %1225 = vmatprep.subr.bf16.mxu0 0
    %1226 = vmatpush1.bf16.msra.mxu0 %v1113
    %1227 = vmatprep.subr.bf16.mxu0 0
    %1228 = vmatpush1.bf16.msra.mxu0 0
    %1229 = vmatprep.subr.bf16.mxu0 0
    %1230 = vmatpush1.bf16.msra.mxu0 0
    %1231 = vmatprep.subr.bf16.mxu0 0
    %1232 = vmatpush1.bf16.msra.mxu0 0
    %1233 = vmatprep.subr.bf16.mxu0 0
    %1234 = vmatpush1.bf16.msra.mxu0 0
    %1235 = vmatprep.subr.bf16.mxu0 0
    %1236 = vmatpush1.bf16.msra.mxu0 0
    %1237 = vmatprep.subr.bf16.mxu0 0
    %1238 = vmatpush1.bf16.msra.mxu0 0
    %1239 = vmatprep.subr.bf16.mxu0 0
    %1240 = vmatpush1.bf16.msra.mxu0 0
    %1241 = vmatprep.subr.bf16.mxu0 0
    %1242 = vmatpush1.bf16.msra.mxu0 0
    %1243 = vmatprep.mubr.bf16.mxu0 0
    %1244 = vmatmul.mubr.bf16.gmra.mrb[0].mxu0 %v974
    %v1245 = vpop.f32.mrb[0].mxu0
    %v1246 = vadd.f32 0.0, %v1245
    %v1247 = vpop.f32.mrb[0].mxu0
    %v1248 = vpop.f32.mrb[0].mxu0
    %v1249 = vadd.f32 0.0, %v1248
    %v1250 = vpop.f32.mrb[0].mxu0
    %1251 = vmatprep.mubr.bf16.mxu0 0
    %1252 = vmatmul.mubr.bf16.gmra.mrb[0].mxu0 %v975
    %v1253 = vpop.f32.mrb[0].mxu0
    %v1254 = vadd.f32 0.0, %v1253
    %v1255 = vpop.f32.mrb[0].mxu0
    %v1256 = vpop.f32.mrb[0].mxu0
    %v1257 = vadd.f32 0.0, %v1256
    %v1258 = vpop.f32.mrb[0].mxu0
    %1259 = vmatprep.mubr.bf16.mxu0 0
    %1260 = vmatmul.mubr.bf16.gmra.mrb[0].mxu0 %v976
    %v1261 = vpop.f32.mrb[0].mxu0
    %v1262 = vadd.f32 0.0, %v1261
    %v1263 = vpop.f32.mrb[0].mxu0
    %v1264 = vpop.f32.mrb[0].mxu0
    %v1265 = vadd.f32 0.0, %v1264
    %v1266 = vpop.f32.mrb[0].mxu0
    %1267 = vmatprep.mubr.bf16.mxu0 0
    %1268 = vmatmul.mubr.bf16.gmra.mrb[0].mxu0 %v977
    %v1269 = vpop.f32.mrb[0].mxu0
    %v1270 = vadd.f32 0.0, %v1269
    %v1271 = vpop.f32.mrb[0].mxu0
    %v1272 = vpop.f32.mrb[0].mxu0
    %v1273 = vadd.f32 0.0, %v1272
    %v1274 = vpop.f32.mrb[0].mxu0
    %1275 = vdwg.mxu0
    %v1276 = vpack.c.bf16 %v1177, %v1173
    %v1277 = vpack.c.bf16 %v1187, %v1183
    %v1278 = vpack.c.bf16 %v1197, %v1193
    %v1279 = vpack.c.bf16 %v1207, %v1203
    %1280 = vmatprep.subr.bf16.mxu0 0
    %1281 = vmatpush1.bf16.msra.mxu0 %v1276
    %1282 = vmatprep.subr.bf16.mxu0 0
    %1283 = vmatpush1.bf16.msra.mxu0 %v1277
    %1284 = vmatprep.subr.bf16.mxu0 0
    %1285 = vmatpush1.bf16.msra.mxu0 %v1278
    %1286 = vmatprep.subr.bf16.mxu0 0
    %1287 = vmatpush1.bf16.msra.mxu0 %v1279
    %1288 = vmatprep.subr.bf16.mxu0 0
    %1289 = vmatpush1.bf16.msra.mxu0 0
    %1290 = vmatprep.subr.bf16.mxu0 0
    %1291 = vmatpush1.bf16.msra.mxu0 0
    %1292 = vmatprep.subr.bf16.mxu0 0
    %1293 = vmatpush1.bf16.msra.mxu0 0
    %1294 = vmatprep.subr.bf16.mxu0 0
    %1295 = vmatpush1.bf16.msra.mxu0 0
    %1296 = vmatprep.subr.bf16.mxu0 0
    %1297 = vmatpush1.bf16.msra.mxu0 0
    %1298 = vmatprep.subr.bf16.mxu0 0
    %1299 = vmatpush1.bf16.msra.mxu0 0
    %1300 = vmatprep.subr.bf16.mxu0 0
    %1301 = vmatpush1.bf16.msra.mxu0 0
    %1302 = vmatprep.subr.bf16.mxu0 0
    %1303 = vmatpush1.bf16.msra.mxu0 0
    %1304 = vmatprep.subr.bf16.mxu0 0
    %1305 = vmatpush1.bf16.msra.mxu0 0
    %1306 = vmatprep.subr.bf16.mxu0 0
    %1307 = vmatpush1.bf16.msra.mxu0 0
    %1308 = vmatprep.subr.bf16.mxu0 0
    %1309 = vmatpush1.bf16.msra.mxu0 0
    %1310 = vmatprep.subr.bf16.mxu0 0
    %1311 = vmatpush1.bf16.msra.mxu0 0
    %1312 = vmatprep.mubr.bf16.mxu0 0
    %1313 = vmatmul.mubr.bf16.gmra.mrb[0].mxu0 %v218
    %v1314 = vpop.f32.mrb[0].mxu0
    %v1315 = vadd.f32 %v1175, %v1314
    %v1316 = vpop.f32.mrb[0].mxu0
    %v1317 = vpop.f32.mrb[0].mxu0
    %v1318 = vadd.f32 %v1179, %v1317
    %v1319 = vpop.f32.mrb[0].mxu0
    %1320 = vmatprep.mubr.bf16.mxu0 0
    %1321 = vmatmul.mubr.bf16.gmra.mrb[0].mxu0 %v221
    %v1322 = vpop.f32.mrb[0].mxu0
    %v1323 = vadd.f32 %v1185, %v1322
    %v1324 = vpop.f32.mrb[0].mxu0
    %v1325 = vpop.f32.mrb[0].mxu0
    %v1326 = vadd.f32 %v1189, %v1325
    %v1327 = vpop.f32.mrb[0].mxu0
    %1328 = vmatprep.mubr.bf16.mxu0 0
    %1329 = vmatmul.mubr.bf16.gmra.mrb[0].mxu0 %v224
    %v1330 = vpop.f32.mrb[0].mxu0
    %v1331 = vadd.f32 %v1195, %v1330
    %v1332 = vpop.f32.mrb[0].mxu0
    %v1333 = vpop.f32.mrb[0].mxu0
    %v1334 = vadd.f32 %v1199, %v1333
    %v1335 = vpop.f32.mrb[0].mxu0
    %1336 = vmatprep.mubr.bf16.mxu0 0
    %1337 = vmatmul.mubr.bf16.gmra.mrb[0].mxu0 %v227
    %v1338 = vpop.f32.mrb[0].mxu0
    %v1339 = vadd.f32 %v1205, %v1338
    %v1340 = vpop.f32.mrb[0].mxu0
    %v1341 = vpop.f32.mrb[0].mxu0
    %v1342 = vadd.f32 %v1209, %v1341
    %v1343 = vpop.f32.mrb[0].mxu0
    %1344 = vdwg.mxu0
    %v1345 = vld [vmem:[%s13] sm:$0x1]
    %v1347 = vlaneseq
    %v1348 = vshrl.u32 %v1347, 7
    %v1349 = vsub.s32 0, %v1348
    %v1350 = vrot.slane %v1345, %v1349
    %v1352 = vmul.f32 %v1315, %v1350
    %v1353 = vmul.f32 %v1318, %v1350
    %v1354 = vmul.f32 %v1323, %v1350
    %v1355 = vmul.f32 %v1326, %v1350
    %v1356 = vmul.f32 %v1331, %v1350
    %v1357 = vmul.f32 %v1334, %v1350
    %v1358 = vmul.f32 %v1339, %v1350
    %v1359 = vmul.f32 %v1342, %v1350
    %v1360 = vld [vmem:[%s14] sm:$0x1]
    %v1362 = vlaneseq
    %v1363 = vshrl.u32 %v1362, 7
    %v1364 = vsub.s32 0, %v1363
    %v1365 = vrot.slane %v1360, %v1364
    %v1367 = vadd.f32 %v1352, %v1365
    %v1368 = vadd.f32 %v1353, %v1365
    %v1369 = vadd.f32 %v1354, %v1365
    %v1370 = vadd.f32 %v1355, %v1365
    %v1371 = vadd.f32 %v1356, %v1365
    %v1372 = vadd.f32 %v1357, %v1365
    %v1373 = vadd.f32 %v1358, %v1365
    %v1374 = vadd.f32 %v1359, %v1365
    %v1375 = vmax.f32 %v1367, 0.0
    %v1376 = vmax.f32 %v1368, 0.0
    %v1377 = vmax.f32 %v1369, 0.0
    %v1378 = vmax.f32 %v1370, 0.0
    %v1379 = vmax.f32 %v1371, 0.0
    %v1380 = vmax.f32 %v1372, 0.0
    %v1381 = vmax.f32 %v1373, 0.0
    %v1382 = vmax.f32 %v1374, 0.0
    %v1383 = vadd.f32 %v1375, %v1246
    %v1384 = vadd.f32 %v1376, %v1249
    %v1385 = vadd.f32 %v1377, %v1254
    %v1386 = vadd.f32 %v1378, %v1257
    %v1387 = vadd.f32 %v1379, %v1262
    %v1388 = vadd.f32 %v1380, %v1265
    %v1389 = vadd.f32 %v1381, %v1270
    %v1390 = vadd.f32 %v1382, %v1273
    %v1391 = vld [vmem:[%s15] sm:$0x1]
    %v1393 = vlaneseq
    %v1394 = vshrl.u32 %v1393, 7
    %v1395 = vsub.s32 0, %v1394
    %v1396 = vrot.slane %v1391, %v1395
    %v1398 = vadd.f32 %v1383, %v1396
    %v1399 = vadd.f32 %v1384, %v1396
    %v1400 = vadd.f32 %v1385, %v1396
    %v1401 = vadd.f32 %v1386, %v1396
    %v1402 = vadd.f32 %v1387, %v1396
    %v1403 = vadd.f32 %v1388, %v1396
    %v1404 = vadd.f32 %v1389, %v1396
    %v1405 = vadd.f32 %v1390, %v1396
    %v1406 = vpack.c.bf16 %v1399, %v1398
    %v1407 = vpack.c.bf16 %v1401, %v1400
    %v1408 = vpack.c.bf16 %v1403, %v1402
    %v1409 = vpack.c.bf16 %v1405, %v1404
    %v1410 = vlaneseq
    %v1411 = vand.u32 %v1410, 127
    %v1412 = vld [vmem:[%s0] sm:$0xff]
    %v1413 = vld [vmem:[%s0 + $0x8] sm:$0xff]
    %v1414 = vld [vmem:[%s0 + $0x10] sm:$0xff]
    %v1415 = vld [vmem:[%s0 + $0x18] sm:$0xff]
    %1416 = vset.pattern.permute.xlu0 0
    %1417 = vperm.xlu0 %1416, %v1412
    %v1418 = vpop.permute.xlu0 %1417
    %1419 = vset.pattern.permute.xlu0 0
    %1420 = vperm.xlu0 %1419, %v1413
    %v1421 = vpop.permute.xlu0 %1420
    %1422 = vset.pattern.permute.xlu0 0
    %1423 = vperm.xlu0 %1422, %v1414
    %v1424 = vpop.permute.xlu0 %1423
    %1425 = vset.pattern.permute.xlu0 0
    %1426 = vperm.xlu0 %1425, %v1415
    %v1427 = vpop.permute.xlu0 %1426
    %vm1428 = vcmp.eq.s32.totalorder %v1411, %v1418
    %vm1429 = vcmp.eq.s32.totalorder %v1411, %v1421
    %vm1430 = vcmp.eq.s32.totalorder %v1411, %v1424
    %vm1431 = vcmp.eq.s32.totalorder %v1411, %v1427
    %v1432 = vsel %vm1428, 1, 0
    %v1433 = vsel %vm1429, 1, 0
    %v1434 = vsel %vm1430, 1, 0
    %v1435 = vsel %vm1431, 1, 0
    %v1436 = vcvt.s32.f32 %v1432
    %v1437 = vcvt.s32.f32 %v1433
    %v1438 = vcvt.s32.f32 %v1434
    %v1439 = vcvt.s32.f32 %v1435
    %v1440 = vpack.c.bf16 %v1437, %v1436
    %v1441 = vpack.c.bf16 %v1439, %v1438
    %v1443 = vsel %vm216, %v1440, 0
    %v1446 = vsel %vm216, %v1441, 0
    %1448 = vmatprep.subr.bf16.mxu0 0
    %1449 = vmatpush1.bf16.msra.mxu0 %v1406
    %1450 = vmatprep.subr.bf16.mxu0 0
    %1451 = vmatpush1.bf16.msra.mxu0 %v1407
    %1452 = vmatprep.subr.bf16.mxu0 0
    %1453 = vmatpush1.bf16.msra.mxu0 %v1408
    %1454 = vmatprep.subr.bf16.mxu0 0
    %1455 = vmatpush1.bf16.msra.mxu0 %v1409
    %1456 = vmatprep.subr.bf16.mxu0 0
    %1457 = vmatpush1.bf16.msra.mxu0 0
    %1458 = vmatprep.subr.bf16.mxu0 0
    %1459 = vmatpush1.bf16.msra.mxu0 0
    %1460 = vmatprep.subr.bf16.mxu0 0
    %1461 = vmatpush1.bf16.msra.mxu0 0
    %1462 = vmatprep.subr.bf16.mxu0 0
    %1463 = vmatpush1.bf16.msra.mxu0 0
    %1464 = vmatprep.subr.bf16.mxu0 0
    %1465 = vmatpush1.bf16.msra.mxu0 0
    %1466 = vmatprep.subr.bf16.mxu0 0
    %1467 = vmatpush1.bf16.msra.mxu0 0
    %1468 = vmatprep.subr.bf16.mxu0 0
    %1469 = vmatpush1.bf16.msra.mxu0 0
    %1470 = vmatprep.subr.bf16.mxu0 0
    %1471 = vmatpush1.bf16.msra.mxu0 0
    %1472 = vmatprep.subr.bf16.mxu0 0
    %1473 = vmatpush1.bf16.msra.mxu0 0
    %1474 = vmatprep.subr.bf16.mxu0 0
    %1475 = vmatpush1.bf16.msra.mxu0 0
    %1476 = vmatprep.subr.bf16.mxu0 0
    %1477 = vmatpush1.bf16.msra.mxu0 0
    %1478 = vmatprep.subr.bf16.mxu0 0
    %1479 = vmatpush1.bf16.msra.mxu0 0
    %1480 = vmatprep.mubr.bf16.mxu0 0
    %1481 = vmatmul.mubr.bf16.gmra.mrb[0].mxu0 %v1443
    %v1482 = vpop.f32.mrb[0].mxu0
    %v1483 = vadd.f32 0.0, %v1482
    %v1484 = vpop.f32.mrb[0].mxu0
    %v1485 = vpop.f32.mrb[0].mxu0
    %v1486 = vadd.f32 0.0, %v1485
    %v1487 = vpop.f32.mrb[0].mxu0
    %1488 = vmatprep.mubr.bf16.mxu0 0
    %1489 = vmatmul.mubr.bf16.gmra.mrb[0].mxu0 %v1446
    %v1490 = vpop.f32.mrb[0].mxu0
    %v1491 = vadd.f32 0.0, %v1490
    %v1492 = vpop.f32.mrb[0].mxu0
    %v1493 = vpop.f32.mrb[0].mxu0
    %v1494 = vadd.f32 0.0, %v1493
    %v1495 = vpop.f32.mrb[0].mxu0
    %1496 = vdwg.mxu0
    %v1497 = vmul.f32 %v1483, %v1491
    %v1498 = vmul.f32 %v1486, %v1494
    %1499 = vadd.xlane.f32.xlu0 %v1497
    %v1500 = vpop.xlane.xlu0 %1499
    %1501 = vadd.xlane.f32.xlu0 %v1498
    %v1502 = vpop.xlane.xlu0 %1501
    %v1503 = vmul.f32 %v1483, %v1483
    %v1504 = vmul.f32 %v1486, %v1486
    %1505 = vadd.xlane.f32.xlu0 %v1503
    %v1506 = vpop.xlane.xlu0 %1505
    %1507 = vadd.xlane.f32.xlu0 %v1504
    %v1508 = vpop.xlane.xlu0 %1507
    %v1509 = vmul.f32 %v1491, %v1491
    %v1510 = vmul.f32 %v1494, %v1494
    %1511 = vadd.xlane.f32.xlu0 %v1509
    %v1512 = vpop.xlane.xlu0 %1511
    %1513 = vadd.xlane.f32.xlu0 %v1510
    %v1514 = vpop.xlane.xlu0 %1513
    %v1515 = vadd.f32 %v1506, %v1512
    %v1516 = vadd.f32 %v1508, %v1514
    %v1517 = vmul.f32 %v1500, 2.0
    %v1518 = vmul.f32 %v1502, 2.0
    %v1519 = vsub.f32 %v1515, %v1517
    %v1520 = vsub.f32 %v1516, %v1518
    %v1521 = vmax.f32 %v1519, 0.0
    %v1522 = vmax.f32 %v1520, 0.0
    %v1523 = vrsqrt.pop %v1521
    %v1524 = vmul.f32 %v1521, %v1523
    %vm1525 = vcmp.eq.f32.partialorder %v1521, inf
    %v1526 = vsel %vm1525, %v1521, %v1524
    %vm1527 = vcmp.eq.f32.partialorder %v1521, 0.0
    %v1528 = vand.u32 %v1521, 2147483648
    %v1529 = vsel %vm1527, %v1528, %v1526
    %v1530 = vrsqrt.pop %v1522
    %v1531 = vmul.f32 %v1522, %v1530
    %vm1532 = vcmp.eq.f32.partialorder %v1522, inf
    %v1533 = vsel %vm1532, %v1522, %v1531
    %vm1534 = vcmp.eq.f32.partialorder %v1522, 0.0
    %v1535 = vand.u32 %v1522, 2147483648
    %v1536 = vsel %vm1534, %v1535, %v1533
    %v1537 = vsub.f32 %v1483, %v1491
    %v1538 = vsub.f32 %v1486, %v1494
    %v1539 = vand.u32 2147483647, %v1537
    %v1540 = vand.u32 2147483647, %v1538
    %1541 = vadd.xlane.f32.xlu0 %v1539
    %v1542 = vpop.xlane.xlu0 %1541
    %1543 = vadd.xlane.f32.xlu0 %v1540
    %v1544 = vpop.xlane.xlu0 %1543
    %v1545 = vrsqrt.pop %v1506
    %v1546 = vmul.f32 %v1506, %v1545
    %vm1547 = vcmp.eq.f32.partialorder %v1506, inf
    %v1548 = vsel %vm1547, %v1506, %v1546
    %vm1549 = vcmp.eq.f32.partialorder %v1506, 0.0
    %v1550 = vand.u32 %v1506, 2147483648
    %v1551 = vsel %vm1549, %v1550, %v1548
    %v1552 = vrsqrt.pop %v1508
    %v1553 = vmul.f32 %v1508, %v1552
    %vm1554 = vcmp.eq.f32.partialorder %v1508, inf
    %v1555 = vsel %vm1554, %v1508, %v1553
    %vm1556 = vcmp.eq.f32.partialorder %v1508, 0.0
    %v1557 = vand.u32 %v1508, 2147483648
    %v1558 = vsel %vm1556, %v1557, %v1555
    %v1559 = vmax.f32 %v1551, 1e-08
    %v1560 = vmax.f32 %v1558, 1e-08
    %v1561 = vrsqrt.pop %v1512
    %v1562 = vmul.f32 %v1512, %v1561
    %vm1563 = vcmp.eq.f32.partialorder %v1512, inf
    %v1564 = vsel %vm1563, %v1512, %v1562
    %vm1565 = vcmp.eq.f32.partialorder %v1512, 0.0
    %v1566 = vand.u32 %v1512, 2147483648
    %v1567 = vsel %vm1565, %v1566, %v1564
    %v1568 = vrsqrt.pop %v1514
    %v1569 = vmul.f32 %v1514, %v1568
    %vm1570 = vcmp.eq.f32.partialorder %v1514, inf
    %v1571 = vsel %vm1570, %v1514, %v1569
    %vm1572 = vcmp.eq.f32.partialorder %v1514, 0.0
    %v1573 = vand.u32 %v1514, 2147483648
    %v1574 = vsel %vm1572, %v1573, %v1571
    %v1575 = vmax.f32 %v1567, 1e-08
    %v1576 = vmax.f32 %v1574, 1e-08
    %v1577 = vmul.f32 %v1559, %v1575
    %v1578 = vmul.f32 %v1560, %v1576
    %v1579 = vrcp.pop %v1577
    %v1580 = vmul.f32 %v1500, %v1579
    %v1581 = vrcp.pop %v1578
    %v1582 = vmul.f32 %v1502, %v1581
    %v1583 = vpack.c.bf16 %v1486, %v1483
    %v1584 = vpack.c.bf16 %v1494, %v1491
    %v1585 = vld [vmem:[%s17] sm:$0xff]
    %v1586 = vld [vmem:[%s16] sm:$0xff]
    %v1587 = vld [vmem:[%s16 + $0x8] sm:$0xff]
    %v1588 = vld [vmem:[%s16 + $0x10] sm:$0xff]
    %v1589 = vld [vmem:[%s16 + $0x18] sm:$0xff]
    %v1590 = vld [vmem:[%s16 + $0x20] sm:$0xff]
    %v1591 = vld [vmem:[%s16 + $0x28] sm:$0xff]
    %v1592 = vld [vmem:[%s16 + $0x30] sm:$0xff]
    %v1593 = vld [vmem:[%s16 + $0x38] sm:$0xff]
    %v1594 = vld [vmem:[%s16 + $0x40] sm:$0xff]
    %v1595 = vld [vmem:[%s16 + $0x48] sm:$0xff]
    %v1596 = vld [vmem:[%s16 + $0x50] sm:$0xff]
    %v1597 = vld [vmem:[%s16 + $0x58] sm:$0xff]
    %v1598 = vld [vmem:[%s16 + $0x60] sm:$0xff]
    %v1599 = vld [vmem:[%s16 + $0x68] sm:$0xff]
    %v1600 = vld [vmem:[%s16 + $0x70] sm:$0xff]
    %v1601 = vld [vmem:[%s16 + $0x78] sm:$0xff]
    %v1602 = vld [vmem:[%s16 + $0x80] sm:$0xff]
    %v1603 = vld [vmem:[%s16 + $0x88] sm:$0xff]
    %v1604 = vld [vmem:[%s16 + $0x90] sm:$0xff]
    %v1605 = vld [vmem:[%s16 + $0x98] sm:$0xff]
    %v1606 = vld [vmem:[%s16 + $0xa0] sm:$0xff]
    %v1607 = vld [vmem:[%s16 + $0xa8] sm:$0xff]
    %v1608 = vld [vmem:[%s16 + $0xb0] sm:$0xff]
    %v1609 = vld [vmem:[%s16 + $0xb8] sm:$0xff]
    %v1610 = vld [vmem:[%s16 + $0xc0] sm:$0xff]
    %v1611 = vld [vmem:[%s16 + $0xc8] sm:$0xff]
    %v1612 = vld [vmem:[%s16 + $0xd0] sm:$0xff]
    %v1613 = vld [vmem:[%s16 + $0xd8] sm:$0xff]
    %v1614 = vld [vmem:[%s16 + $0xe0] sm:$0xff]
    %v1615 = vld [vmem:[%s16 + $0xe8] sm:$0xff]
    %v1616 = vld [vmem:[%s16 + $0xf0] sm:$0xff]
    %v1617 = vld [vmem:[%s16 + $0xf8] sm:$0xff]
    %v1619 = vlaneseq
    %v1620 = vshrl.u32 %v1619, 7
    %v1621 = vsub.s32 0, %v1620
    %v1622 = vrot.slane %v1585, %v1621
    %v1623 = vlaneseq
    %v1624 = vshrl.u32 %v1623, 7
    %v1625 = vsub.s32 4, %v1624
    %v1626 = vrot.slane %v1585, %v1625
    %v1629 = vlaneseq
    %v1630 = vshrl.u32 %v1629, 7
    %v1631 = vsub.s32 0, %v1630
    %v1632 = vrot.slane %v1622, %v1631
    %v1633 = vlaneseq
    %v1634 = vshrl.u32 %v1633, 7
    %v1635 = vsub.s32 0, %v1634
    %v1636 = vrot.slane %v1626, %v1635
    %v1637 = vmul.f32 %v1500, %v1632
    %v1638 = vmul.f32 %v1500, %v1636
    %v1639 = vmul.f32 %v1502, %v1632
    %v1640 = vmul.f32 %v1502, %v1636
    %v1673 = vunpack.c.l.b16 %v1586
    %v1674 = vunpack.c.h.b16 %v1586
    %v1675 = vunpack.c.l.b16 %v1587
    %v1676 = vunpack.c.h.b16 %v1587
    %v1677 = vunpack.c.l.b16 %v1588
    %v1678 = vunpack.c.h.b16 %v1588
    %v1679 = vunpack.c.l.b16 %v1589
    %v1680 = vunpack.c.h.b16 %v1589
    %v1681 = vunpack.c.l.b16 %v1590
    %v1682 = vunpack.c.h.b16 %v1590
    %v1683 = vunpack.c.l.b16 %v1591
    %v1684 = vunpack.c.h.b16 %v1591
    %v1685 = vunpack.c.l.b16 %v1592
    %v1686 = vunpack.c.h.b16 %v1592
    %v1687 = vunpack.c.l.b16 %v1593
    %v1688 = vunpack.c.h.b16 %v1593
    %v1689 = vunpack.c.l.b16 %v1594
    %v1690 = vunpack.c.h.b16 %v1594
    %v1691 = vunpack.c.l.b16 %v1595
    %v1692 = vunpack.c.h.b16 %v1595
    %v1693 = vunpack.c.l.b16 %v1596
    %v1694 = vunpack.c.h.b16 %v1596
    %v1695 = vunpack.c.l.b16 %v1597
    %v1696 = vunpack.c.h.b16 %v1597
    %v1697 = vunpack.c.l.b16 %v1598
    %v1698 = vunpack.c.h.b16 %v1598
    %v1699 = vunpack.c.l.b16 %v1599
    %v1700 = vunpack.c.h.b16 %v1599
    %v1701 = vunpack.c.l.b16 %v1600
    %v1702 = vunpack.c.h.b16 %v1600
    %v1703 = vunpack.c.l.b16 %v1601
    %v1704 = vunpack.c.h.b16 %v1601
    %v1705 = vunpack.c.l.b16 %v1602
    %v1706 = vunpack.c.h.b16 %v1602
    %v1707 = vunpack.c.l.b16 %v1603
    %v1708 = vunpack.c.h.b16 %v1603
    %v1709 = vunpack.c.l.b16 %v1604
    %v1710 = vunpack.c.h.b16 %v1604
    %v1711 = vunpack.c.l.b16 %v1605
    %v1712 = vunpack.c.h.b16 %v1605
    %v1713 = vunpack.c.l.b16 %v1606
    %v1714 = vunpack.c.h.b16 %v1606
    %v1715 = vunpack.c.l.b16 %v1607
    %v1716 = vunpack.c.h.b16 %v1607
    %v1717 = vunpack.c.l.b16 %v1608
    %v1718 = vunpack.c.h.b16 %v1608
    %v1719 = vunpack.c.l.b16 %v1609
    %v1720 = vunpack.c.h.b16 %v1609
    %v1721 = vunpack.c.l.b16 %v1610
    %v1722 = vunpack.c.h.b16 %v1610
    %v1723 = vunpack.c.l.b16 %v1611
    %v1724 = vunpack.c.h.b16 %v1611
    %v1725 = vunpack.c.l.b16 %v1612
    %v1726 = vunpack.c.h.b16 %v1612
    %v1727 = vunpack.c.l.b16 %v1613
    %v1728 = vunpack.c.h.b16 %v1613
    %v1729 = vunpack.c.l.b16 %v1614
    %v1730 = vunpack.c.h.b16 %v1614
    %v1731 = vunpack.c.l.b16 %v1615
    %v1732 = vunpack.c.h.b16 %v1615
    %v1733 = vunpack.c.l.b16 %v1616
    %v1734 = vunpack.c.h.b16 %v1616
    %v1735 = vunpack.c.l.b16 %v1617
    %v1736 = vunpack.c.h.b16 %v1617
    %v1737 = vpack.c.b16 %v1675, %v1673
    %v1738 = vpack.c.b16 %v1676, %v1674
    %v1739 = vpack.c.b16 %v1679, %v1677
    %v1740 = vpack.c.b16 %v1680, %v1678
    %v1741 = vpack.c.b16 %v1683, %v1681
    %v1742 = vpack.c.b16 %v1684, %v1682
    %v1743 = vpack.c.b16 %v1687, %v1685
    %v1744 = vpack.c.b16 %v1688, %v1686
    %v1745 = vpack.c.b16 %v1691, %v1689
    %v1746 = vpack.c.b16 %v1692, %v1690
    %v1747 = vpack.c.b16 %v1695, %v1693
    %v1748 = vpack.c.b16 %v1696, %v1694
    %v1749 = vpack.c.b16 %v1699, %v1697
    %v1750 = vpack.c.b16 %v1700, %v1698
    %v1751 = vpack.c.b16 %v1703, %v1701
    %v1752 = vpack.c.b16 %v1704, %v1702
    %v1753 = vpack.c.b16 %v1707, %v1705
    %v1754 = vpack.c.b16 %v1708, %v1706
    %v1755 = vpack.c.b16 %v1711, %v1709
    %v1756 = vpack.c.b16 %v1712, %v1710
    %v1757 = vpack.c.b16 %v1715, %v1713
    %v1758 = vpack.c.b16 %v1716, %v1714
    %v1759 = vpack.c.b16 %v1719, %v1717
    %v1760 = vpack.c.b16 %v1720, %v1718
    %v1761 = vpack.c.b16 %v1723, %v1721
    %v1762 = vpack.c.b16 %v1724, %v1722
    %v1763 = vpack.c.b16 %v1727, %v1725
    %v1764 = vpack.c.b16 %v1728, %v1726
    %v1765 = vpack.c.b16 %v1731, %v1729
    %v1766 = vpack.c.b16 %v1732, %v1730
    %v1767 = vpack.c.b16 %v1735, %v1733
    %v1768 = vpack.c.b16 %v1736, %v1734
    %1801 = vmatprep.subr.bf16.mxu0 %v1738
    %1802 = vmatpush1.bf16.msra.mxu0 %v1737
    %1803 = vmatprep.subr.bf16.mxu0 %v1740
    %1804 = vmatpush1.bf16.msra.mxu0 %v1739
    %1805 = vmatprep.subr.bf16.mxu0 %v1742
    %1806 = vmatpush1.bf16.msra.mxu0 %v1741
    %1807 = vmatprep.subr.bf16.mxu0 %v1744
    %1808 = vmatpush1.bf16.msra.mxu0 %v1743
    %1809 = vmatprep.subr.bf16.mxu0 %v1746
    %1810 = vmatpush1.bf16.msra.mxu0 %v1745
    %1811 = vmatprep.subr.bf16.mxu0 %v1748
    %1812 = vmatpush1.bf16.msra.mxu0 %v1747
    %1813 = vmatprep.subr.bf16.mxu0 %v1750
    %1814 = vmatpush1.bf16.msra.mxu0 %v1749
    %1815 = vmatprep.subr.bf16.mxu0 %v1752
    %1816 = vmatpush1.bf16.msra.mxu0 %v1751
    %1817 = vmatprep.subr.bf16.mxu0 %v1754
    %1818 = vmatpush1.bf16.msra.mxu0 %v1753
    %1819 = vmatprep.subr.bf16.mxu0 %v1756
    %1820 = vmatpush1.bf16.msra.mxu0 %v1755
    %1821 = vmatprep.subr.bf16.mxu0 %v1758
    %1822 = vmatpush1.bf16.msra.mxu0 %v1757
    %1823 = vmatprep.subr.bf16.mxu0 %v1760
    %1824 = vmatpush1.bf16.msra.mxu0 %v1759
    %1825 = vmatprep.subr.bf16.mxu0 %v1762
    %1826 = vmatpush1.bf16.msra.mxu0 %v1761
    %1827 = vmatprep.subr.bf16.mxu0 %v1764
    %1828 = vmatpush1.bf16.msra.mxu0 %v1763
    %1829 = vmatprep.subr.bf16.mxu0 %v1766
    %1830 = vmatpush1.bf16.msra.mxu0 %v1765
    %1831 = vmatprep.subr.bf16.mxu0 %v1768
    %1832 = vmatpush1.bf16.msra.mxu0 %v1767
    %1833 = vmatprep.mubr.bf16.mxu0 %v1584
    %1834 = vmatmul.mubr.bf16.gmra.mrb[0].mxu0 %v1583
    %v1835 = vpop.f32.mrb[0].mxu0
    %v1836 = vadd.f32 %v1637, %v1835
    %v1837 = vpop.f32.mrb[0].mxu0
    %v1838 = vadd.f32 %v1638, %v1837
    %v1839 = vpop.f32.mrb[0].mxu0
    %v1840 = vadd.f32 %v1639, %v1839
    %v1841 = vpop.f32.mrb[0].mxu0
    %v1842 = vadd.f32 %v1640, %v1841
    %1843 = vdwg.mxu0
    %v1844 = vlaneseq
    %v1845 = vshrl.u32 %v1844, 7
    %v1846 = vsub.s32 1, %v1845
    %v1847 = vrot.slane %v1585, %v1846
    %v1848 = vlaneseq
    %v1849 = vshrl.u32 %v1848, 7
    %v1850 = vsub.s32 5, %v1849
    %v1851 = vrot.slane %v1585, %v1850
    %v1854 = vlaneseq
    %v1855 = vshrl.u32 %v1854, 7
    %v1856 = vsub.s32 1, %v1855
    %v1857 = vrot.slane %v1847, %v1856
    %v1858 = vlaneseq
    %v1859 = vshrl.u32 %v1858, 7
    %v1860 = vsub.s32 1, %v1859
    %v1861 = vrot.slane %v1851, %v1860
    %v1862 = vmul.f32 %v1529, %v1857
    %v1863 = vmul.f32 %v1529, %v1861
    %v1864 = vmul.f32 %v1536, %v1857
    %v1865 = vmul.f32 %v1536, %v1861
    %v1866 = vadd.f32 %v1836, %v1862
    %v1867 = vadd.f32 %v1838, %v1863
    %v1868 = vadd.f32 %v1840, %v1864
    %v1869 = vadd.f32 %v1842, %v1865
    %v1870 = vlaneseq
    %v1871 = vshrl.u32 %v1870, 7
    %v1872 = vsub.s32 2, %v1871
    %v1873 = vrot.slane %v1585, %v1872
    %v1874 = vlaneseq
    %v1875 = vshrl.u32 %v1874, 7
    %v1876 = vsub.s32 6, %v1875
    %v1877 = vrot.slane %v1585, %v1876
    %v1880 = vlaneseq
    %v1881 = vshrl.u32 %v1880, 7
    %v1882 = vsub.s32 2, %v1881
    %v1883 = vrot.slane %v1873, %v1882
    %v1884 = vlaneseq
    %v1885 = vshrl.u32 %v1884, 7
    %v1886 = vsub.s32 2, %v1885
    %v1887 = vrot.slane %v1877, %v1886
    %v1888 = vmul.f32 %v1542, %v1883
    %v1889 = vmul.f32 %v1542, %v1887
    %v1890 = vmul.f32 %v1544, %v1883
    %v1891 = vmul.f32 %v1544, %v1887
    %v1892 = vadd.f32 %v1866, %v1888
    %v1893 = vadd.f32 %v1867, %v1889
    %v1894 = vadd.f32 %v1868, %v1890
    %v1895 = vadd.f32 %v1869, %v1891
    %v1896 = vlaneseq
    %v1897 = vshrl.u32 %v1896, 7
    %v1898 = vsub.s32 3, %v1897
    %v1899 = vrot.slane %v1585, %v1898
    %v1900 = vlaneseq
    %v1901 = vshrl.u32 %v1900, 7
    %v1902 = vsub.s32 7, %v1901
    %v1903 = vrot.slane %v1585, %v1902
    %v1906 = vlaneseq
    %v1907 = vshrl.u32 %v1906, 7
    %v1908 = vsub.s32 3, %v1907
    %v1909 = vrot.slane %v1899, %v1908
    %v1910 = vlaneseq
    %v1911 = vshrl.u32 %v1910, 7
    %v1912 = vsub.s32 3, %v1911
    %v1913 = vrot.slane %v1903, %v1912
    %v1914 = vmul.f32 %v1580, %v1909
    %v1915 = vmul.f32 %v1580, %v1913
    %v1916 = vmul.f32 %v1582, %v1909
    %v1917 = vmul.f32 %v1582, %v1913
    %v1918 = vadd.f32 %v1892, %v1914
    %v1919 = vadd.f32 %v1893, %v1915
    %v1920 = vadd.f32 %v1894, %v1916
    %v1921 = vadd.f32 %v1895, %v1917
    %v1922 = vld [vmem:[%s18] sm:$0x3]
    %v1924 = vlaneseq
    %v1925 = vshrl.u32 %v1924, 7
    %v1926 = vsub.s32 0, %v1925
    %v1927 = vrot.slane %v1922, %v1926
    %v1928 = vlaneseq
    %v1929 = vshrl.u32 %v1928, 7
    %v1930 = vsub.s32 1, %v1929
    %v1931 = vrot.slane %v1922, %v1930
    %v1934 = vmul.f32 %v1918, %v1927
    %v1935 = vmul.f32 %v1919, %v1931
    %v1936 = vmul.f32 %v1920, %v1927
    %v1937 = vmul.f32 %v1921, %v1931
    %v1938 = vld [vmem:[%s19] sm:$0x3]
    %v1940 = vlaneseq
    %v1941 = vshrl.u32 %v1940, 7
    %v1942 = vsub.s32 0, %v1941
    %v1943 = vrot.slane %v1938, %v1942
    %v1944 = vlaneseq
    %v1945 = vshrl.u32 %v1944, 7
    %v1946 = vsub.s32 1, %v1945
    %v1947 = vrot.slane %v1938, %v1946
    %v1950 = vadd.f32 %v1934, %v1943
    %v1951 = vadd.f32 %v1935, %v1947
    %v1952 = vadd.f32 %v1936, %v1943
    %v1953 = vadd.f32 %v1937, %v1947
    %v1954 = vmax.f32 %v1950, 0.0
    %v1955 = vmax.f32 %v1951, 0.0
    %v1956 = vmax.f32 %v1952, 0.0
    %v1957 = vmax.f32 %v1953, 0.0
    %v1958 = vpack.c.bf16 %v1956, %v1954
    %v1959 = vpack.c.bf16 %v1957, %v1955
    %v1960 = vld [vmem:[#allocation7] sm:$0xf]
    %v1961 = vld [vmem:[#allocation7 + $0x4] sm:$0xf]
    %v1962 = vld [vmem:[#allocation7 + $0x8] sm:$0xf]
    %v1963 = vld [vmem:[#allocation7 + $0xc] sm:$0xf]
    %v1964 = vld [vmem:[#allocation7 + $0x10] sm:$0xf]
    %v1965 = vld [vmem:[#allocation7 + $0x14] sm:$0xf]
    %v1966 = vld [vmem:[#allocation7 + $0x18] sm:$0xf]
    %v1967 = vld [vmem:[#allocation7 + $0x1c] sm:$0xf]
    %v1968 = vld [vmem:[#allocation7 + $0x20] sm:$0xf]
    %v1969 = vld [vmem:[#allocation7 + $0x24] sm:$0xf]
    %v1970 = vld [vmem:[#allocation7 + $0x28] sm:$0xf]
    %v1971 = vld [vmem:[#allocation7 + $0x2c] sm:$0xf]
    %v1972 = vld [vmem:[#allocation7 + $0x30] sm:$0xf]
    %v1973 = vld [vmem:[#allocation7 + $0x34] sm:$0xf]
    %v1974 = vld [vmem:[#allocation7 + $0x38] sm:$0xf]
    %v1975 = vld [vmem:[#allocation7 + $0x3c] sm:$0xf]
    %v1976 = vld [vmem:[#allocation7 + $0x40] sm:$0xf]
    %v1977 = vld [vmem:[#allocation7 + $0x44] sm:$0xf]
    %v1978 = vld [vmem:[#allocation7 + $0x48] sm:$0xf]
    %v1979 = vld [vmem:[#allocation7 + $0x4c] sm:$0xf]
    %v1980 = vld [vmem:[#allocation7 + $0x50] sm:$0xf]
    %v1981 = vld [vmem:[#allocation7 + $0x54] sm:$0xf]
    %v1982 = vld [vmem:[#allocation7 + $0x58] sm:$0xf]
    %v1983 = vld [vmem:[#allocation7 + $0x5c] sm:$0xf]
    %v1984 = vld [vmem:[#allocation7 + $0x60] sm:$0xf]
    %v1985 = vld [vmem:[#allocation7 + $0x64] sm:$0xf]
    %v1986 = vld [vmem:[#allocation7 + $0x68] sm:$0xf]
    %v1987 = vld [vmem:[#allocation7 + $0x6c] sm:$0xf]
    %v1988 = vld [vmem:[#allocation7 + $0x70] sm:$0xf]
    %v1989 = vld [vmem:[#allocation7 + $0x74] sm:$0xf]
    %v1990 = vld [vmem:[#allocation7 + $0x78] sm:$0xf]
    %v1991 = vld [vmem:[#allocation7 + $0x7c] sm:$0xf]
    %v2024 = vunpack.c.l.b16 %v1960
    %v2025 = vunpack.c.l.b16 %v1961
    %v2026 = vunpack.c.l.b16 %v1962
    %v2027 = vunpack.c.l.b16 %v1963
    %v2028 = vunpack.c.l.b16 %v1964
    %v2029 = vunpack.c.l.b16 %v1965
    %v2030 = vunpack.c.l.b16 %v1966
    %v2031 = vunpack.c.l.b16 %v1967
    %v2032 = vunpack.c.l.b16 %v1968
    %v2033 = vunpack.c.l.b16 %v1969
    %v2034 = vunpack.c.l.b16 %v1970
    %v2035 = vunpack.c.l.b16 %v1971
    %v2036 = vunpack.c.l.b16 %v1972
    %v2037 = vunpack.c.l.b16 %v1973
    %v2038 = vunpack.c.l.b16 %v1974
    %v2039 = vunpack.c.l.b16 %v1975
    %v2040 = vunpack.c.l.b16 %v1976
    %v2041 = vunpack.c.l.b16 %v1977
    %v2042 = vunpack.c.l.b16 %v1978
    %v2043 = vunpack.c.l.b16 %v1979
    %v2044 = vunpack.c.l.b16 %v1980
    %v2045 = vunpack.c.l.b16 %v1981
    %v2046 = vunpack.c.l.b16 %v1982
    %v2047 = vunpack.c.l.b16 %v1983
    %v2048 = vunpack.c.l.b16 %v1984
    %v2049 = vunpack.c.l.b16 %v1985
    %v2050 = vunpack.c.l.b16 %v1986
    %v2051 = vunpack.c.l.b16 %v1987
    %v2052 = vunpack.c.l.b16 %v1988
    %v2053 = vunpack.c.l.b16 %v1989
    %v2054 = vunpack.c.l.b16 %v1990
    %v2055 = vunpack.c.l.b16 %v1991
    %v2056 = vpack.c.b16 %v2025, %v2024
    %v2057 = vpack.c.b16 %v2027, %v2026
    %v2058 = vpack.c.b16 %v2029, %v2028
    %v2059 = vpack.c.b16 %v2031, %v2030
    %v2060 = vpack.c.b16 %v2033, %v2032
    %v2061 = vpack.c.b16 %v2035, %v2034
    %v2062 = vpack.c.b16 %v2037, %v2036
    %v2063 = vpack.c.b16 %v2039, %v2038
    %v2064 = vpack.c.b16 %v2041, %v2040
    %v2065 = vpack.c.b16 %v2043, %v2042
    %v2066 = vpack.c.b16 %v2045, %v2044
    %v2067 = vpack.c.b16 %v2047, %v2046
    %v2068 = vpack.c.b16 %v2049, %v2048
    %v2069 = vpack.c.b16 %v2051, %v2050
    %v2070 = vpack.c.b16 %v2053, %v2052
    %v2071 = vpack.c.b16 %v2055, %v2054
    %2088 = vmatprep.subr.bf16.mxu0 0
    %2089 = vmatpush1.bf16.msra.mxu0 %v2056
    %2090 = vmatprep.subr.bf16.mxu0 0
    %2091 = vmatpush1.bf16.msra.mxu0 %v2057
    %2092 = vmatprep.subr.bf16.mxu0 0
    %2093 = vmatpush1.bf16.msra.mxu0 %v2058
    %2094 = vmatprep.subr.bf16.mxu0 0
    %2095 = vmatpush1.bf16.msra.mxu0 %v2059
    %2096 = vmatprep.subr.bf16.mxu0 0
    %2097 = vmatpush1.bf16.msra.mxu0 %v2060
    %2098 = vmatprep.subr.bf16.mxu0 0
    %2099 = vmatpush1.bf16.msra.mxu0 %v2061
    %2100 = vmatprep.subr.bf16.mxu0 0
    %2101 = vmatpush1.bf16.msra.mxu0 %v2062
    %2102 = vmatprep.subr.bf16.mxu0 0
    %2103 = vmatpush1.bf16.msra.mxu0 %v2063
    %2104 = vmatprep.subr.bf16.mxu0 0
    %2105 = vmatpush1.bf16.msra.mxu0 %v2064
    %2106 = vmatprep.subr.bf16.mxu0 0
    %2107 = vmatpush1.bf16.msra.mxu0 %v2065
    %2108 = vmatprep.subr.bf16.mxu0 0
    %2109 = vmatpush1.bf16.msra.mxu0 %v2066
    %2110 = vmatprep.subr.bf16.mxu0 0
    %2111 = vmatpush1.bf16.msra.mxu0 %v2067
    %2112 = vmatprep.subr.bf16.mxu0 0
    %2113 = vmatpush1.bf16.msra.mxu0 %v2068
    %2114 = vmatprep.subr.bf16.mxu0 0
    %2115 = vmatpush1.bf16.msra.mxu0 %v2069
    %2116 = vmatprep.subr.bf16.mxu0 0
    %2117 = vmatpush1.bf16.msra.mxu0 %v2070
    %2118 = vmatprep.subr.bf16.mxu0 0
    %2119 = vmatpush1.bf16.msra.mxu0 %v2071
    %2120 = vmatprep.mubr.bf16.mxu0 %v1959
    %2121 = vmatmul.mubr.bf16.gmra.mrb[0].mxu0 %v1958
    %v2122 = vpop.f32.mrb[0].mxu0
    %v2123 = vadd.f32 0.0, %v2122
    %v2124 = vpop.f32.mrb[0].mxu0
    %v2125 = vpop.f32.mrb[0].mxu0
    %v2126 = vadd.f32 0.0, %v2125
    %v2127 = vpop.f32.mrb[0].mxu0
    %2128 = vdwg.mxu0
    %v2129 = vld [vmem:[%s21] sm:$0x1]
    %v2131 = vlaneseq
    %v2132 = vshrl.u32 %v2131, 7
    %v2133 = vsub.s32 0, %v2132
    %v2134 = vrot.slane %v2129, %v2133
    %v2136 = vmul.f32 %v2123, %v2134
    %v2137 = vmul.f32 %v2126, %v2134
    %v2138 = vld [vmem:[%s22] sm:$0x1]
    %v2140 = vlaneseq
    %v2141 = vshrl.u32 %v2140, 7
    %v2142 = vsub.s32 0, %v2141
    %v2143 = vrot.slane %v2138, %v2142
    %v2145 = vadd.f32 %v2136, %v2143
    %v2146 = vadd.f32 %v2137, %v2143
    %v2147 = vmax.f32 %v2145, 0.0
    %v2148 = vmax.f32 %v2146, 0.0
    %v2149 = vpack.c.bf16 %v2148, %v2147
    %v2150 = vld [vmem:[%s23] sm:$0xf]
    %v2151 = vld [vmem:[%s23 + $0x4] sm:$0xf]
    %v2152 = vld [vmem:[%s23 + $0x8] sm:$0xf]
    %v2153 = vld [vmem:[%s23 + $0xc] sm:$0xf]
    %v2154 = vld [vmem:[%s23 + $0x10] sm:$0xf]
    %v2155 = vld [vmem:[%s23 + $0x14] sm:$0xf]
    %v2156 = vld [vmem:[%s23 + $0x18] sm:$0xf]
    %v2157 = vld [vmem:[%s23 + $0x1c] sm:$0xf]
    %v2158 = vld [vmem:[%s23 + $0x20] sm:$0xf]
    %v2159 = vld [vmem:[%s23 + $0x24] sm:$0xf]
    %v2160 = vld [vmem:[%s23 + $0x28] sm:$0xf]
    %v2161 = vld [vmem:[%s23 + $0x2c] sm:$0xf]
    %v2162 = vld [vmem:[%s23 + $0x30] sm:$0xf]
    %v2163 = vld [vmem:[%s23 + $0x34] sm:$0xf]
    %v2164 = vld [vmem:[%s23 + $0x38] sm:$0xf]
    %v2165 = vld [vmem:[%s23 + $0x3c] sm:$0xf]
    %v2182 = vunpack.c.l.b16 %v2150
    %v2183 = vunpack.c.l.b16 %v2151
    %v2184 = vunpack.c.l.b16 %v2152
    %v2185 = vunpack.c.l.b16 %v2153
    %v2186 = vunpack.c.l.b16 %v2154
    %v2187 = vunpack.c.l.b16 %v2155
    %v2188 = vunpack.c.l.b16 %v2156
    %v2189 = vunpack.c.l.b16 %v2157
    %v2190 = vunpack.c.l.b16 %v2158
    %v2191 = vunpack.c.l.b16 %v2159
    %v2192 = vunpack.c.l.b16 %v2160
    %v2193 = vunpack.c.l.b16 %v2161
    %v2194 = vunpack.c.l.b16 %v2162
    %v2195 = vunpack.c.l.b16 %v2163
    %v2196 = vunpack.c.l.b16 %v2164
    %v2197 = vunpack.c.l.b16 %v2165
    %v2198 = vpack.c.b16 %v2183, %v2182
    %v2199 = vpack.c.b16 %v2185, %v2184
    %v2200 = vpack.c.b16 %v2187, %v2186
    %v2201 = vpack.c.b16 %v2189, %v2188
    %v2202 = vpack.c.b16 %v2191, %v2190
    %v2203 = vpack.c.b16 %v2193, %v2192
    %v2204 = vpack.c.b16 %v2195, %v2194
    %v2205 = vpack.c.b16 %v2197, %v2196
    %2214 = vmatprep.subr.bf16.mxu0 0
    %2215 = vmatpush1.bf16.msra.mxu0 %v2198
    %2216 = vmatprep.subr.bf16.mxu0 0
    %2217 = vmatpush1.bf16.msra.mxu0 %v2199
    %2218 = vmatprep.subr.bf16.mxu0 0
    %2219 = vmatpush1.bf16.msra.mxu0 %v2200
    %2220 = vmatprep.subr.bf16.mxu0 0
    %2221 = vmatpush1.bf16.msra.mxu0 %v2201
    %2222 = vmatprep.subr.bf16.mxu0 0
    %2223 = vmatpush1.bf16.msra.mxu0 %v2202
    %2224 = vmatprep.subr.bf16.mxu0 0
    %2225 = vmatpush1.bf16.msra.mxu0 %v2203
    %2226 = vmatprep.subr.bf16.mxu0 0
    %2227 = vmatpush1.bf16.msra.mxu0 %v2204
    %2228 = vmatprep.subr.bf16.mxu0 0
    %2229 = vmatpush1.bf16.msra.mxu0 %v2205
    %2230 = vmatprep.subr.bf16.mxu0 0
    %2231 = vmatpush1.bf16.msra.mxu0 0
    %2232 = vmatprep.subr.bf16.mxu0 0
    %2233 = vmatpush1.bf16.msra.mxu0 0
    %2234 = vmatprep.subr.bf16.mxu0 0
    %2235 = vmatpush1.bf16.msra.mxu0 0
    %2236 = vmatprep.subr.bf16.mxu0 0
    %2237 = vmatpush1.bf16.msra.mxu0 0
    %2238 = vmatprep.subr.bf16.mxu0 0
    %2239 = vmatpush1.bf16.msra.mxu0 0
    %2240 = vmatprep.subr.bf16.mxu0 0
    %2241 = vmatpush1.bf16.msra.mxu0 0
    %2242 = vmatprep.subr.bf16.mxu0 0
    %2243 = vmatpush1.bf16.msra.mxu0 0
    %2244 = vmatprep.subr.bf16.mxu0 0
    %2245 = vmatpush1.bf16.msra.mxu0 0
    %2246 = vmatprep.mubr.bf16.mxu0 0
    %2247 = vmatmul.mubr.bf16.gmra.mrb[0].mxu0 %v2149
    %v2248 = vpop.f32.mrb[0].mxu0
    %v2249 = vadd.f32 0.0, %v2248
    %v2250 = vpop.f32.mrb[0].mxu0
    %v2251 = vpop.f32.mrb[0].mxu0
    %v2252 = vadd.f32 0.0, %v2251
    %v2253 = vpop.f32.mrb[0].mxu0
    %2254 = vdwg.mxu0
    %v2255 = vld [vmem:[#allocation8] sm:$0x1]
    %v2257 = vlaneseq
    %v2258 = vshrl.u32 %v2257, 7
    %v2259 = vsub.s32 0, %v2258
    %v2260 = vrot.slane %v2255, %v2259
    %v2262 = vmul.f32 %v2249, %v2260
    %v2263 = vmul.f32 %v2252, %v2260
    %v2264 = vld [vmem:[#allocation10] sm:$0x1]
    %v2266 = vlaneseq
    %v2267 = vshrl.u32 %v2266, 7
    %v2268 = vsub.s32 0, %v2267
    %v2269 = vrot.slane %v2264, %v2268
    %v2271 = vadd.f32 %v2262, %v2269
    %v2272 = vadd.f32 %v2263, %v2269
    %v2273 = vmax.f32 %v2271, 0.0
    %v2274 = vmax.f32 %v2272, 0.0
    %v2275 = vld [vmem:[%s26] sm:$0x1]
    %v2277 = vlaneseq
    %v2278 = vshrl.u32 %v2277, 7
    %v2279 = vsub.s32 0, %v2278
    %v2280 = vrot.slane %v2275, %v2279
    %v2282 = vmul.f32 %v2273, %v2280
    %v2283 = vmul.f32 %v2274, %v2280
    %v2284 = vsel %vm216, %v2282, 0.0
    %2285 = vadd.xlane.f32.xlu0 %v2284
    %v2286 = vpop.xlane.xlu0 %2285
    %v2287 = vsel %vm216, %v2283, 0.0
    %2288 = vadd.xlane.f32.xlu0 %v2287
    %v2289 = vpop.xlane.xlu0 %2288
    %v2290 = vld [vmem:[#allocation2] sm:$0x1]
    %v2292 = vlaneseq
    %v2293 = vshrl.u32 %v2292, 7
    %v2294 = vsub.s32 0, %v2293
    %v2295 = vrot.slane %v2290, %v2294
    %v2297 = vadd.f32 %v2286, %v2295
    %v2298 = vadd.f32 %v2289, %v2295
    %vm2299 = vcmask 7168
    %2300 = vst.msk [vmem:[%s28] sm:$0xff] %vm2299, %v2297
    %2301 = vst.msk [vmem:[%s28 + $0x8] sm:$0xff] %vm2299, %v2298
    // Predicated region
    $region134: #{graphsage_link_predictor.1} parent=1 // pred_check
      _
    $region135: #{graphsage_link_predictor.1} parent=1 // pred_check_branch
      %2303 = sbr.rel (0) target = $region137
    $region136: #{graphsage_link_predictor.1} parent=1 // pred_region
      _
    $region137: #{graphsage_link_predictor.1} parent=1 // pred_fallthru
      _
    // Predicated region
    $region138: #{graphsage_link_predictor.1} parent=1 // pred_check
      _
    $region139: #{graphsage_link_predictor.1} parent=1 // pred_check_branch
      %2305 = sbr.rel (0) target = $region141
    $region140: #{graphsage_link_predictor.1} parent=1 // pred_region
      _
    $region141: #{graphsage_link_predictor.1} parent=1 // pred_fallthru
      _
    %2306 = vsyncpa [#allocation4], 1
    %2307 = vsyncpa [#allocation6], 1
    %2308 = vsyncpa [#allocation9], 1

</llo_original>
